<compile_context>
chip_gen: v5e
topology: v5e:2x2
jax: 0.10.0
libtpu: 0.0.40
codegen_flags: <defaults>
</compile_context>

<pallas_src>
import functools

import jax
import jax.numpy as jnp
from jax import lax
from jax.experimental import pallas as pl
from jax.experimental.pallas import tpu as pltpu

H_PAD = 128          # hidden feature dim padded to the 128-lane width
EDGE_TILE = 256      # edges per one-hot MXU tile (multiple of 8 and of 128)


def _round_up(n, m):
    return ((n + m - 1) // m) * m


def _vmem_limit_bytes():
    # generation-aware VMEM budget: ~100 MiB on v5e/v6e (128 MiB physical),
    # ~48 MiB on v7x (64 MiB physical)
    try:
        cap = pltpu.get_tpu_info().vmem_capacity_bytes
    except Exception:
        cap = 64 * 1024 * 1024
    return int(min(cap - 16 * 1024 * 1024, 100 * 1024 * 1024))


# --------------------------------------------------------------------------- fused kernel
def _fused_regrnet_kernel(
        # index inputs (int32)
        src_row_ref, src_col_ref, dst_row_ref, dst_col_ref, bs_row_ref, bt_row_ref,
        # feature inputs
        xs_ref, xt_ref, xe_ref, y_ref,
        # embedding weights (bf16) / biases (f32)
        wes_ref, bes_ref, wet_ref, bet_ref, wee_ref, bee_ref,
        # per-layer GCN weights (bf16) / biases (f32), blocked along the layer axis
        ws_ref, bsl_ref, wt_ref, btl_ref,
        # prediction-head weights
        wcfg_ref, bcfg_ref, wps_ref, wpt_ref, wy_ref, bpred_ref,
        # output
        o_ref,
        # VMEM scratch (persists across the layer grid axis)
        hs_sc, ht_sc, he_sc, aggs_sc, aggt_sc, ps_sc, pt_sc,
        *, num_layers, n_edge_tiles, edge_tile, ns_p, nt_p, pool_rows):
    bf = jnp.bfloat16
    f32 = jnp.float32
    layer = pl.program_id(0)

    # ---------------- layer 0: fused embeddings (Linear + ReLU) into bf16 residents ----
    @pl.when(layer == 0)
    def _():
        hs_sc[...] = jnp.maximum(
            jnp.dot(xs_ref[...], wes_ref[...], preferred_element_type=f32)
            + bes_ref[...], 0.0).astype(bf)
        ht_sc[...] = jnp.maximum(
            jnp.dot(xt_ref[...], wet_ref[...], preferred_element_type=f32)
            + bet_ref[...], 0.0).astype(bf)
        he_sc[...] = jnp.maximum(
            jnp.dot(xe_ref[...], wee_ref[...], preferred_element_type=f32)
            + bee_ref[...], 0.0).astype(bf)
        o_ref[...] = jnp.zeros_like(o_ref)

    # ---------------- message passing: tiled one-hot gather / scatter on the MXU -------
    aggs_sc[...] = jnp.zeros_like(aggs_sc)
    aggt_sc[...] = jnp.zeros_like(aggt_sc)

    def edge_tile_body(t, off):
        src_r = src_row_ref[t]                       # (1, TE)  int32
        dst_r = dst_row_ref[t]
        src_c = src_col_ref[t]                       # (TE, 1)  int32
        dst_c = dst_col_ref[t]
        he = he_sc[pl.ds(off, edge_tile), :].astype(f32)          # (TE, H)

        # one-hot masks (padded edges carry index -1 -> all-zero rows/cols)
        e_iota_s = lax.broadcasted_iota(jnp.int32, (edge_tile, ns_p), 1)
        oh_src = (e_iota_s == src_c).astype(bf)                   # (TE, ns_p)
        e_iota_t = lax.broadcasted_iota(jnp.int32, (edge_tile, nt_p), 1)
        oh_dst = (e_iota_t == dst_c).astype(bf)                   # (TE, nt_p)
        n_iota_s = lax.broadcasted_iota(jnp.int32, (ns_p, edge_tile), 0)
        oh_src_t = (n_iota_s == src_r).astype(bf)                 # (ns_p, TE)
        n_iota_t = lax.broadcasted_iota(jnp.int32, (nt_p, edge_tile), 0)
        oh_dst_t = (n_iota_t == dst_r).astype(bf)                 # (nt_p, TE)

        # gather (MXU), edge-weight multiply (VPU), scatter-add (MXU, f32 accumulate)
        gat_t = jnp.dot(oh_dst, ht_sc[...], preferred_element_type=f32)   # (TE, H)
        gat_s = jnp.dot(oh_src, hs_sc[...], preferred_element_type=f32)
        msg_s = (gat_t * he).astype(bf)        # messages into s-nodes
        msg_t = (gat_s * he).astype(bf)        # messages into t-nodes
        aggs_sc[...] += jnp.dot(oh_src_t, msg_s, preferred_element_type=f32)
        aggt_sc[...] += jnp.dot(oh_dst_t, msg_t, preferred_element_type=f32)

    if n_edge_tiles == 1:
        edge_tile_body(0, 0)
    else:
        def body(t, carry):
            edge_tile_body(t, pl.multiple_of(t * edge_tile, edge_tile))
            return carry
        lax.fori_loop(0, n_edge_tiles, body, 0)

    # ---------------- per-layer dense transform + ReLU + fused global_add_pool ---------
    w_s = ws_ref[0]                                  # (H, H) bf16 (pre-cast in wrapper)
    w_t = wt_ref[0]
    z_s = (hs_sc[...].astype(f32) + aggs_sc[...]).astype(bf)
    z_t = (ht_sc[...].astype(f32) + aggt_sc[...]).astype(bf)
    new_s = jnp.maximum(
        jnp.dot(z_s, w_s, preferred_element_type=f32) + bsl_ref[0], 0.0).astype(bf)
    new_t = jnp.maximum(
        jnp.dot(z_t, w_t, preferred_element_type=f32) + btl_ref[0], 0.0).astype(bf)
    hs_sc[...] = new_s
    ht_sc[...] = new_t

    # global_add_pool: in-register one-hot over the per-node graph index (sentinel -1
    # keeps padded node rows out of every graph's sum)
    g_iota_s = lax.broadcasted_iota(jnp.int32, (pool_rows, ns_p), 0)
    pool_s = (g_iota_s == bs_row_ref[...]).astype(bf)             # (pool_rows, ns_p)
    g_iota_t = lax.broadcasted_iota(jnp.int32, (pool_rows, nt_p), 0)
    pool_t = (g_iota_t == bt_row_ref[...]).astype(bf)
    ps_sc[layer] = jnp.dot(pool_s, new_s, preferred_element_type=f32)
    pt_sc[layer] = jnp.dot(pool_t, new_t, preferred_element_type=f32)

    # ---------------- last layer: fused prediction head --------------------------------
    @pl.when(layer == num_layers - 1)
    def _():
        y_emb = jnp.dot(y_ref[...], wcfg_ref[...],
                        preferred_element_type=f32) + bcfg_ref[...]        # mlp_config
        acc = jnp.sum(y_emb * wy_ref[...], axis=-1, keepdims=True)         # (pool_rows,1)
        for l in range(num_layers):          # static unroll, num_layers is small
            acc = acc + jnp.sum(ps_sc[l] * wps_ref[l], axis=-1, keepdims=True)
            acc = acc + jnp.sum(pt_sc[l] * wpt_ref[l], axis=-1, keepdims=True)
        acc = acc + bpred_ref[...]
        # lane-dense (pool_rows, 128) write; column 0 is sliced outside
        o_ref[...] = jnp.broadcast_to(acc, o_ref.shape)


# ----------------------------------------------------------------------------- parameters
def init_params(key, din_s, din_t, din_e, hidden, num_layers, task_dim):
    def lin_p(k, fan_in, fan_out):
        kw, kb = jax.random.split(k)
        w = 0.1 * jax.random.normal(kw, (fan_in, fan_out), jnp.float32)
        b = 0.1 * jax.random.normal(kb, (1, fan_out), jnp.float32)
        return w, b

    keys = jax.random.split(key, 5 + 2 * num_layers)
    return {
        "emb_s": lin_p(keys[0], din_s, hidden),
        "emb_t": lin_p(keys[1], din_t, hidden),
        "emb_e": lin_p(keys[2], din_e, hidden),
        "layers_s": [lin_p(keys[5 + 2 * l], hidden, hidden) for l in range(num_layers)],
        "layers_t": [lin_p(keys[6 + 2 * l], hidden, hidden) for l in range(num_layers)],
        # predictMLP(task_dim, task_dim, mlp_hidden, num_layers=0) -> single Linear
        "mlp_config": lin_p(keys[3], task_dim, task_dim),
        # predictMLP(2*jk_dim + task_dim, 1, mlp_hidden, num_layers=0) -> single Linear
        "mlp_pred": lin_p(keys[4], 2 * hidden * num_layers + task_dim, 1),
    }


# ----------------------------------------------------------------------------- forward
def regrnet_forward(params, x_s, x_t, edge_attr, edge_index, x_s_batch, x_t_batch, y,
                    num_graphs):
    f32, bf16, i32 = jnp.float32, jnp.bfloat16, jnp.int32
    hidden = params["emb_s"][0].shape[1]
    num_layers = len(params["layers_s"])
    task_dim = params["mlp_config"][0].shape[0]
    assert hidden <= H_PAD

    ns, nt, ne = x_s.shape[0], x_t.shape[0], edge_attr.shape[0]
    ns_p = _round_up(ns, 8)
    nt_p = _round_up(nt, 8)
    if ne <= EDGE_TILE:
        edge_tile = _round_up(max(ne, 1), 8)
        n_edge_tiles = 1
    else:
        edge_tile = EDGE_TILE
        n_edge_tiles = -(-ne // EDGE_TILE)
    ne_p = n_edge_tiles * edge_tile
    pool_rows = _round_up(max(num_graphs, 1), 8)
    din_s_p = _round_up(x_s.shape[1], 8)        # contraction dims kept near true din
    din_t_p = _round_up(x_t.shape[1], 8)
    din_e_p = _round_up(edge_attr.shape[1], 8)
    td_p = _round_up(task_dim, 8)

    def pad2(a, rows, cols, dtype):
        out = jnp.zeros((rows, cols), f32)
        out = out.at[: a.shape[0], : a.shape[1]].set(a.astype(f32))
        return out.astype(dtype)

    # features (bf16 pre-cast halves DMA), y in f32
    xs_p = pad2(x_s, ns_p, din_s_p, bf16)
    xt_p = pad2(x_t, nt_p, din_t_p, bf16)
    xe_p = pad2(edge_attr, ne_p, din_e_p, bf16)
    y_p = pad2(y, pool_rows, td_p, f32)

    # embedding weights (bf16) / biases (f32); zero padding keeps logical outputs exact
    wes = pad2(params["emb_s"][0], din_s_p, H_PAD, bf16)
    bes = pad2(params["emb_s"][1], 1, H_PAD, f32)
    wet = pad2(params["emb_t"][0], din_t_p, H_PAD, bf16)
    bet = pad2(params["emb_t"][1], 1, H_PAD, f32)
    wee = pad2(params["emb_e"][0], din_e_p, H_PAD, bf16)
    bee = pad2(params["emb_e"][1], 1, H_PAD, f32)

    # per-layer GCN weights (bf16 stacks) / biases (f32 stacks)
    ws = jnp.stack([pad2(w, H_PAD, H_PAD, bf16) for w, _ in params["layers_s"]])
    bsl = jnp.stack([pad2(b, 1, H_PAD, f32) for _, b in params["layers_s"]])
    wt = jnp.stack([pad2(w, H_PAD, H_PAD, bf16) for w, _ in params["layers_t"]])
    btl = jnp.stack([pad2(b, 1, H_PAD, f32) for _, b in params["layers_t"]])

    # prediction-head weights: per-layer (1, 128) rows instead of mostly-zero matrices
    wcfg = pad2(params["mlp_config"][0], td_p, td_p, f32)
    bcfg = pad2(params["mlp_config"][1], 1, td_p, f32)
    w_pred, b_pred = params["mlp_pred"]              # (2*jk_dim + task_dim, 1), (1, 1)
    jk_dim = hidden * num_layers
    wps = jnp.zeros((num_layers, 1, H_PAD), f32)
    wpt = jnp.zeros((num_layers, 1, H_PAD), f32)
    for l in range(num_layers):
        wps = wps.at[l, 0, :hidden].set(w_pred[l * hidden:(l + 1) * hidden, 0])
        wpt = wpt.at[l, 0, :hidden].set(
            w_pred[jk_dim + l * hidden: jk_dim + (l + 1) * hidden, 0])
    wy = jnp.zeros((1, td_p), f32).at[0, :task_dim].set(w_pred[2 * jk_dim:, 0])
    bpred = b_pred.astype(f32).reshape(1, 1)

    # edge indices in both row and column orientations (padded edges -> -1 sentinel)
    src = jnp.full((ne_p,), -1, i32).at[:ne].set(edge_index[0].astype(i32))
    dst = jnp.full((ne_p,), -1, i32).at[:ne].set(edge_index[1].astype(i32))
    src_row = src.reshape(n_edge_tiles, 1, edge_tile)
    src_col = src.reshape(n_edge_tiles, edge_tile, 1)
    dst_row = dst.reshape(n_edge_tiles, 1, edge_tile)
    dst_col = dst.reshape(n_edge_tiles, edge_tile, 1)

    # per-node graph indices (padded nodes -> -1, pooled to nowhere)
    bs_row = jnp.full((1, ns_p), -1, i32).at[0, :ns].set(x_s_batch.astype(i32))
    bt_row = jnp.full((1, nt_p), -1, i32).at[0, :nt].set(x_t_batch.astype(i32))

    args = (src_row, src_col, dst_row, dst_col, bs_row, bt_row,
            xs_p, xt_p, xe_p, y_p,
            wes, bes, wet, bet, wee, bee,
            ws, bsl, wt, btl,
            wcfg, bcfg, wps, wpt, wy, bpred)

    def full_spec(a):
        z = (0,) * a.ndim
        return pl.BlockSpec(a.shape, lambda l, _z=z: _z)

    def layer_spec(a):
        return pl.BlockSpec((1,) + tuple(a.shape[1:]), lambda l: (l, 0, 0))

    in_specs = [full_spec(src_row), full_spec(src_col), full_spec(dst_row),
                full_spec(dst_col), full_spec(bs_row), full_spec(bt_row),
                full_spec(xs_p), full_spec(xt_p), full_spec(xe_p), full_spec(y_p),
                full_spec(wes), full_spec(bes), full_spec(wet), full_spec(bet),
                full_spec(wee), full_spec(bee),
                layer_spec(ws), layer_spec(bsl), layer_spec(wt), layer_spec(btl),
                full_spec(wcfg), full_spec(bcfg), full_spec(wps), full_spec(wpt),
                full_spec(wy), full_spec(bpred)]

    H = H_PAD
    flops = (num_layers * 4 * ne_p * (ns_p + nt_p) * H            # one-hot gather/scatter
             + num_layers * 2 * (ns_p + nt_p) * H * H             # layer dense transforms
             + num_layers * 2 * (ns_p + nt_p) * pool_rows * H     # fused pooling
             + 2 * (ns_p * din_s_p + nt_p * din_t_p + ne_p * din_e_p) * H)   # embeddings
    bytes_acc = sum(int(a.size) * a.dtype.itemsize for a in args) + pool_rows * H * 4

    kernel = functools.partial(
        _fused_regrnet_kernel,
        num_layers=num_layers, n_edge_tiles=n_edge_tiles, edge_tile=edge_tile,
        ns_p=ns_p, nt_p=nt_p, pool_rows=pool_rows)

    out = pl.pallas_call(
        kernel,
        grid=(num_layers,),
        in_specs=in_specs,
        out_specs=pl.BlockSpec((pool_rows, H_PAD), lambda l: (0, 0)),
        out_shape=jax.ShapeDtypeStruct((pool_rows, H_PAD), jnp.float32),
        scratch_shapes=[
            pltpu.VMEM((ns_p, H_PAD), bf16),                      # h_s (resident)
            pltpu.VMEM((nt_p, H_PAD), bf16),                      # h_t (resident)
            pltpu.VMEM((ne_p, H_PAD), bf16),                      # h_e (resident)
            pltpu.VMEM((ns_p, H_PAD), f32),                       # agg_s (f32 accumulate)
            pltpu.VMEM((nt_p, H_PAD), f32),                       # agg_t
            pltpu.VMEM((num_layers, pool_rows, H_PAD), f32),      # pooled JK, s-side
            pltpu.VMEM((num_layers, pool_rows, H_PAD), f32),      # pooled JK, t-side
        ],
        compiler_params=pltpu.CompilerParams(
            dimension_semantics=("arbitrary",),
            vmem_limit_bytes=_vmem_limit_bytes()),
        cost_estimate=pl.CostEstimate(flops=int(flops), transcendentals=0,
                                      bytes_accessed=int(bytes_acc)),
    )(*args)
    return out[:num_graphs, :1]                                   # (B, 1)


# ----------------------------------------------------------------------------- main
if __name__ == "__main__":
    B = 2            # graphs in batch
    NS, NT, E = 12, 10, 24
    DIN_S, DIN_T, DIN_E = 5, 6, 3
    HIDDEN, NUM_LAYERS = 16, 2
    TASK_DIM = 4

    key = jax.random.PRNGKey(0)
    k_par, k_xs, k_xt, k_ea, k_ei, k_y = jax.random.split(key, 6)

    params = init_params(k_par, DIN_S, DIN_T, DIN_E, HIDDEN, NUM_LAYERS, TASK_DIM)

    x_s = jax.random.normal(k_xs, (NS, DIN_S), jnp.float32)
    x_t = jax.random.normal(k_xt, (NT, DIN_T), jnp.float32)
    edge_attr = jax.random.normal(k_ea, (E, DIN_E), jnp.float32)
    k_src, k_dst = jax.random.split(k_ei)
    edge_index = jnp.stack(
        [jax.random.randint(k_src, (E,), 0, NS),
         jax.random.randint(k_dst, (E,), 0, NT)],
        axis=0,
    )  # (2, E): row 0 indexes x_s, row 1 indexes x_t
    x_s_batch = jnp.array([0] * (NS // 2) + [1] * (NS - NS // 2), dtype=jnp.int32)
    x_t_batch = jnp.array([0] * (NT // 2) + [1] * (NT - NT // 2), dtype=jnp.int32)
    y = jax.random.normal(k_y, (B, TASK_DIM), jnp.float32)

    out = regrnet_forward(params, x_s, x_t, edge_attr, edge_index,
                          x_s_batch, x_t_batch, y, num_graphs=B)
    out = jax.block_until_ready(out)
    assert out.shape == (B, 1) and out.dtype == jnp.float32
    assert bool(jnp.all(jnp.isfinite(out)))
    print("KERNEL_OK")
</pallas_src>

<mosaic_0001>
module attributes {stable_mosaic.version = 11 : i64} {
  func.func @_fused_regrnet_kernel(%arg0: i32, %arg1: memref<1x1x24xi32, #tpu.memory_space<vmem>>, %arg2: memref<1x24x1xi32, #tpu.memory_space<vmem>>, %arg3: memref<1x1x24xi32, #tpu.memory_space<vmem>>, %arg4: memref<1x24x1xi32, #tpu.memory_space<vmem>>, %arg5: memref<1x16xi32, #tpu.memory_space<vmem>>, %arg6: memref<1x16xi32, #tpu.memory_space<vmem>>, %arg7: memref<16x8xbf16, #tpu.memory_space<vmem>>, %arg8: memref<16x8xbf16, #tpu.memory_space<vmem>>, %arg9: memref<24x8xbf16, #tpu.memory_space<vmem>>, %arg10: memref<8x8xf32, #tpu.memory_space<vmem>>, %arg11: memref<8x128xbf16, #tpu.memory_space<vmem>>, %arg12: memref<1x128xf32, #tpu.memory_space<vmem>>, %arg13: memref<8x128xbf16, #tpu.memory_space<vmem>>, %arg14: memref<1x128xf32, #tpu.memory_space<vmem>>, %arg15: memref<8x128xbf16, #tpu.memory_space<vmem>>, %arg16: memref<1x128xf32, #tpu.memory_space<vmem>>, %arg17: memref<1x128x128xbf16, #tpu.memory_space<vmem>>, %arg18: memref<1x1x128xf32, #tpu.memory_space<vmem>>, %arg19: memref<1x128x128xbf16, #tpu.memory_space<vmem>>, %arg20: memref<1x1x128xf32, #tpu.memory_space<vmem>>, %arg21: memref<8x8xf32, #tpu.memory_space<vmem>>, %arg22: memref<1x8xf32, #tpu.memory_space<vmem>>, %arg23: memref<2x1x128xf32, #tpu.memory_space<vmem>>, %arg24: memref<2x1x128xf32, #tpu.memory_space<vmem>>, %arg25: memref<1x8xf32, #tpu.memory_space<vmem>>, %arg26: memref<1x1xf32, #tpu.memory_space<vmem>>, %arg27: memref<8x128xf32, #tpu.memory_space<vmem>>, %arg28: memref<16x128xbf16, #tpu.memory_space<vmem>>, %arg29: memref<16x128xbf16, #tpu.memory_space<vmem>>, %arg30: memref<24x128xbf16, #tpu.memory_space<vmem>>, %arg31: memref<16x128xf32, #tpu.memory_space<vmem>>, %arg32: memref<16x128xf32, #tpu.memory_space<vmem>>, %arg33: memref<2x8x128xf32, #tpu.memory_space<vmem>>, %arg34: memref<2x8x128xf32, #tpu.memory_space<vmem>>) attributes {dimension_semantics = [#tpu.dimension_semantics<arbitrary>], iteration_bounds = array<i64: 2>, scalar_prefetch = 0 : i64, scratch_operands = 7 : i64, tpu.core_type = #tpu.core_type<tc>, window_params = [{pipeline_mode = #tpu.pipeline_mode<synchronous>, transform_indices = @transform_0, window_bounds = array<i64: 1, 1, 24>}, {pipeline_mode = #tpu.pipeline_mode<synchronous>, transform_indices = @transform_1, window_bounds = array<i64: 1, 24, 1>}, {pipeline_mode = #tpu.pipeline_mode<synchronous>, transform_indices = @transform_2, window_bounds = array<i64: 1, 1, 24>}, {pipeline_mode = #tpu.pipeline_mode<synchronous>, transform_indices = @transform_3, window_bounds = array<i64: 1, 24, 1>}, {pipeline_mode = #tpu.pipeline_mode<synchronous>, transform_indices = @transform_4, window_bounds = array<i64: 1, 16>}, {pipeline_mode = #tpu.pipeline_mode<synchronous>, transform_indices = @transform_5, window_bounds = array<i64: 1, 16>}, {pipeline_mode = #tpu.pipeline_mode<synchronous>, transform_indices = @transform_6, window_bounds = array<i64: 16, 8>}, {pipeline_mode = #tpu.pipeline_mode<synchronous>, transform_indices = @transform_7, window_bounds = array<i64: 16, 8>}, {pipeline_mode = #tpu.pipeline_mode<synchronous>, transform_indices = @transform_8, window_bounds = array<i64: 24, 8>}, {pipeline_mode = #tpu.pipeline_mode<synchronous>, transform_indices = @transform_9, window_bounds = array<i64: 8, 8>}, {pipeline_mode = #tpu.pipeline_mode<synchronous>, transform_indices = @transform_10, window_bounds = array<i64: 8, 128>}, {pipeline_mode = #tpu.pipeline_mode<synchronous>, transform_indices = @transform_11, window_bounds = array<i64: 1, 128>}, {pipeline_mode = #tpu.pipeline_mode<synchronous>, transform_indices = @transform_12, window_bounds = array<i64: 8, 128>}, {pipeline_mode = #tpu.pipeline_mode<synchronous>, transform_indices = @transform_13, window_bounds = array<i64: 1, 128>}, {pipeline_mode = #tpu.pipeline_mode<synchronous>, transform_indices = @transform_14, window_bounds = array<i64: 8, 128>}, {pipeline_mode = #tpu.pipeline_mode<synchronous>, transform_indices = @transform_15, window_bounds = array<i64: 1, 128>}, {transform_indices = @transform_16, window_bounds = array<i64: 1, 128, 128>}, {transform_indices = @transform_17, window_bounds = array<i64: 1, 1, 128>}, {transform_indices = @transform_18, window_bounds = array<i64: 1, 128, 128>}, {transform_indices = @transform_19, window_bounds = array<i64: 1, 1, 128>}, {pipeline_mode = #tpu.pipeline_mode<synchronous>, transform_indices = @transform_20, window_bounds = array<i64: 8, 8>}, {pipeline_mode = #tpu.pipeline_mode<synchronous>, transform_indices = @transform_21, window_bounds = array<i64: 1, 8>}, {pipeline_mode = #tpu.pipeline_mode<synchronous>, transform_indices = @transform_22, window_bounds = array<i64: 2, 1, 128>}, {pipeline_mode = #tpu.pipeline_mode<synchronous>, transform_indices = @transform_23, window_bounds = array<i64: 2, 1, 128>}, {pipeline_mode = #tpu.pipeline_mode<synchronous>, transform_indices = @transform_24, window_bounds = array<i64: 1, 8>}, {pipeline_mode = #tpu.pipeline_mode<synchronous>, transform_indices = @transform_25, window_bounds = array<i64: 1, 1>}, {pipeline_mode = #tpu.pipeline_mode<synchronous>, transform_indices = @transform_26, window_bounds = array<i64: 8, 128>}]} {
    %c0_i32 = arith.constant 0 : i32
    %0 = arith.cmpi eq, %arg0, %c0_i32 : i32
    %1 = arith.extui %0 : i1 to i32
    %c0_i32_0 = arith.constant 0 : i32
    %2 = arith.cmpi ne, %1, %c0_i32_0 : i32
    scf.if %2 {
      %c0_74 = arith.constant 0 : index
      %c0_75 = arith.constant 0 : index
      %116 = vector.load %arg7[%c0_74, %c0_75] : memref<16x8xbf16, #tpu.memory_space<vmem>>, vector<16x8xbf16>
      %c0_76 = arith.constant 0 : index
      %c0_77 = arith.constant 0 : index
      %117 = vector.load %arg11[%c0_76, %c0_77] : memref<8x128xbf16, #tpu.memory_space<vmem>>, vector<8x128xbf16>
      %cst_78 = arith.constant dense<0.000000e+00> : vector<16x128xf32>
      %118 = tpu.matmul %116, %117, %cst_78 {dimension_numbers = #tpu.dot_dimension_numbers<[1], [0], [0], [1], [0, 0, 1, 1], [], []>} : vector<16x8xbf16>, vector<8x128xbf16>, vector<16x128xf32> -> vector<16x128xf32>
      %c0_79 = arith.constant 0 : index
      %c0_80 = arith.constant 0 : index
      %119 = vector.load %arg12[%c0_79, %c0_80] : memref<1x128xf32, #tpu.memory_space<vmem>>, vector<1x128xf32>
      %120 = vector.broadcast %119 : vector<1x128xf32> to vector<16x128xf32>
      %121 = arith.addf %118, %120 : vector<16x128xf32>
      %cst_81 = arith.constant 0.000000e+00 : f32
      %122 = vector.broadcast %cst_81 : f32 to vector<16x128xf32>
      %123 = arith.maximumf %121, %122 : vector<16x128xf32>
      %124 = arith.truncf %123 : vector<16x128xf32> to vector<16x128xbf16>
      %c0_82 = arith.constant 0 : index
      %c0_83 = arith.constant 0 : index
      %125 = vector.load %arg28[%c0_82, %c0_83] : memref<16x128xbf16, #tpu.memory_space<vmem>>, vector<16x128xbf16>
      tpu.vector_store %arg28[%c0_82, %c0_83], %124 {strides = array<i32>} : memref<16x128xbf16, #tpu.memory_space<vmem>>, vector<16x128xbf16>,
      %c0_84 = arith.constant 0 : index
      %c0_85 = arith.constant 0 : index
      %126 = vector.load %arg8[%c0_84, %c0_85] : memref<16x8xbf16, #tpu.memory_space<vmem>>, vector<16x8xbf16>
      %c0_86 = arith.constant 0 : index
      %c0_87 = arith.constant 0 : index
      %127 = vector.load %arg13[%c0_86, %c0_87] : memref<8x128xbf16, #tpu.memory_space<vmem>>, vector<8x128xbf16>
      %cst_88 = arith.constant dense<0.000000e+00> : vector<16x128xf32>
      %128 = tpu.matmul %126, %127, %cst_88 {dimension_numbers = #tpu.dot_dimension_numbers<[1], [0], [0], [1], [0, 0, 1, 1], [], []>} : vector<16x8xbf16>, vector<8x128xbf16>, vector<16x128xf32> -> vector<16x128xf32>
      %c0_89 = arith.constant 0 : index
      %c0_90 = arith.constant 0 : index
      %129 = vector.load %arg14[%c0_89, %c0_90] : memref<1x128xf32, #tpu.memory_space<vmem>>, vector<1x128xf32>
      %130 = vector.broadcast %129 : vector<1x128xf32> to vector<16x128xf32>
      %131 = arith.addf %128, %130 : vector<16x128xf32>
      %cst_91 = arith.constant 0.000000e+00 : f32
      %132 = vector.broadcast %cst_91 : f32 to vector<16x128xf32>
      %133 = arith.maximumf %131, %132 : vector<16x128xf32>
      %134 = arith.truncf %133 : vector<16x128xf32> to vector<16x128xbf16>
      %c0_92 = arith.constant 0 : index
      %c0_93 = arith.constant 0 : index
      %135 = vector.load %arg29[%c0_92, %c0_93] : memref<16x128xbf16, #tpu.memory_space<vmem>>, vector<16x128xbf16>
      tpu.vector_store %arg29[%c0_92, %c0_93], %134 {strides = array<i32>} : memref<16x128xbf16, #tpu.memory_space<vmem>>, vector<16x128xbf16>,
      %c0_94 = arith.constant 0 : index
      %c0_95 = arith.constant 0 : index
      %136 = vector.load %arg9[%c0_94, %c0_95] : memref<24x8xbf16, #tpu.memory_space<vmem>>, vector<24x8xbf16>
      %c0_96 = arith.constant 0 : index
      %c0_97 = arith.constant 0 : index
      %137 = vector.load %arg15[%c0_96, %c0_97] : memref<8x128xbf16, #tpu.memory_space<vmem>>, vector<8x128xbf16>
      %cst_98 = arith.constant dense<0.000000e+00> : vector<24x128xf32>
      %138 = tpu.matmul %136, %137, %cst_98 {dimension_numbers = #tpu.dot_dimension_numbers<[1], [0], [0], [1], [0, 0, 1, 1], [], []>} : vector<24x8xbf16>, vector<8x128xbf16>, vector<24x128xf32> -> vector<24x128xf32>
      %c0_99 = arith.constant 0 : index
      %c0_100 = arith.constant 0 : index
      %139 = vector.load %arg16[%c0_99, %c0_100] : memref<1x128xf32, #tpu.memory_space<vmem>>, vector<1x128xf32>
      %140 = vector.broadcast %139 : vector<1x128xf32> to vector<24x128xf32>
      %141 = arith.addf %138, %140 : vector<24x128xf32>
      %cst_101 = arith.constant 0.000000e+00 : f32
      %142 = vector.broadcast %cst_101 : f32 to vector<24x128xf32>
      %143 = arith.maximumf %141, %142 : vector<24x128xf32>
      %144 = arith.truncf %143 : vector<24x128xf32> to vector<24x128xbf16>
      %c0_102 = arith.constant 0 : index
      %c0_103 = arith.constant 0 : index
      %145 = vector.load %arg30[%c0_102, %c0_103] : memref<24x128xbf16, #tpu.memory_space<vmem>>, vector<24x128xbf16>
      tpu.vector_store %arg30[%c0_102, %c0_103], %144 {strides = array<i32>} : memref<24x128xbf16, #tpu.memory_space<vmem>>, vector<24x128xbf16>,
      %cst_104 = arith.constant 0.000000e+00 : f32
      %146 = vector.broadcast %cst_104 : f32 to vector<8x128xf32>
      %c0_105 = arith.constant 0 : index
      %c0_106 = arith.constant 0 : index
      %147 = vector.load %arg27[%c0_105, %c0_106] : memref<8x128xf32, #tpu.memory_space<vmem>>, vector<8x128xf32>
      tpu.vector_store %arg27[%c0_105, %c0_106], %146 {strides = array<i32>} : memref<8x128xf32, #tpu.memory_space<vmem>>, vector<8x128xf32>,
    } else {
    }
    %cst = arith.constant 0.000000e+00 : f32
    %3 = vector.broadcast %cst : f32 to vector<16x128xf32>
    %c0 = arith.constant 0 : index
    %c0_1 = arith.constant 0 : index
    %4 = vector.load %arg31[%c0, %c0_1] : memref<16x128xf32, #tpu.memory_space<vmem>>, vector<16x128xf32>
    tpu.vector_store %arg31[%c0, %c0_1], %3 {strides = array<i32>} : memref<16x128xf32, #tpu.memory_space<vmem>>, vector<16x128xf32>,
    %cst_2 = arith.constant 0.000000e+00 : f32
    %5 = vector.broadcast %cst_2 : f32 to vector<16x128xf32>
    %c0_3 = arith.constant 0 : index
    %c0_4 = arith.constant 0 : index
    %6 = vector.load %arg32[%c0_3, %c0_4] : memref<16x128xf32, #tpu.memory_space<vmem>>, vector<16x128xf32>
    tpu.vector_store %arg32[%c0_3, %c0_4], %5 {strides = array<i32>} : memref<16x128xf32, #tpu.memory_space<vmem>>, vector<16x128xf32>,
    %c0_5 = arith.constant 0 : index
    %c0_6 = arith.constant 0 : index
    %c0_7 = arith.constant 0 : index
    %7 = vector.load %arg1[%c0_5, %c0_6, %c0_7] : memref<1x1x24xi32, #tpu.memory_space<vmem>>, vector<1x1x24xi32>
    %8 = vector.shape_cast %7 : vector<1x1x24xi32> to vector<1x24xi32>
    %c0_8 = arith.constant 0 : index
    %c0_9 = arith.constant 0 : index
    %c0_10 = arith.constant 0 : index
    %9 = vector.load %arg3[%c0_8, %c0_9, %c0_10] : memref<1x1x24xi32, #tpu.memory_space<vmem>>, vector<1x1x24xi32>
    %10 = vector.shape_cast %9 : vector<1x1x24xi32> to vector<1x24xi32>
    %c0_11 = arith.constant 0 : index
    %c0_12 = arith.constant 0 : index
    %c0_13 = arith.constant 0 : index
    %11 = vector.load %arg2[%c0_11, %c0_12, %c0_13] : memref<1x24x1xi32, #tpu.memory_space<vmem>>, vector<1x24x1xi32>
    %12 = vector.shape_cast %11 : vector<1x24x1xi32> to vector<24x1xi32>
    %c0_14 = arith.constant 0 : index
    %c0_15 = arith.constant 0 : index
    %c0_16 = arith.constant 0 : index
    %13 = vector.load %arg4[%c0_14, %c0_15, %c0_16] : memref<1x24x1xi32, #tpu.memory_space<vmem>>, vector<1x24x1xi32>
    %14 = vector.shape_cast %13 : vector<1x24x1xi32> to vector<24x1xi32>
    %c0_17 = arith.constant 0 : index
    %c0_18 = arith.constant 0 : index
    %15 = vector.load %arg30[%c0_17, %c0_18] : memref<24x128xbf16, #tpu.memory_space<vmem>>, vector<24x128xbf16>
    %16 = arith.extf %15 : vector<24x128xbf16> to vector<24x128xf32>
    %17 = tpu.iota {dimensions = array<i32: 1>} : vector<24x16xi32>
    %18 = vector.broadcast %12 : vector<24x1xi32> to vector<24x16xi32>
    %19 = arith.cmpi eq, %17, %18 : vector<24x16xi32>
    %20 = arith.extui %19 : vector<24x16xi1> to vector<24x16xi32>
    %21 = arith.sitofp %20 : vector<24x16xi32> to vector<24x16xf32>
    %22 = arith.truncf %21 : vector<24x16xf32> to vector<24x16xbf16>
    %23 = tpu.iota {dimensions = array<i32: 1>} : vector<24x16xi32>
    %24 = vector.broadcast %14 : vector<24x1xi32> to vector<24x16xi32>
    %25 = arith.cmpi eq, %23, %24 : vector<24x16xi32>
    %26 = arith.extui %25 : vector<24x16xi1> to vector<24x16xi32>
    %27 = arith.sitofp %26 : vector<24x16xi32> to vector<24x16xf32>
    %28 = arith.truncf %27 : vector<24x16xf32> to vector<24x16xbf16>
    %29 = tpu.iota {dimensions = array<i32: 0>} : vector<16x24xi32>
    %30 = vector.broadcast %8 : vector<1x24xi32> to vector<16x24xi32>
    %31 = arith.cmpi eq, %29, %30 : vector<16x24xi32>
    %32 = arith.extui %31 : vector<16x24xi1> to vector<16x24xi32>
    %33 = arith.sitofp %32 : vector<16x24xi32> to vector<16x24xf32>
    %34 = arith.truncf %33 : vector<16x24xf32> to vector<16x24xbf16>
    %35 = tpu.iota {dimensions = array<i32: 0>} : vector<16x24xi32>
    %36 = vector.broadcast %10 : vector<1x24xi32> to vector<16x24xi32>
    %37 = arith.cmpi eq, %35, %36 : vector<16x24xi32>
    %38 = arith.extui %37 : vector<16x24xi1> to vector<16x24xi32>
    %39 = arith.sitofp %38 : vector<16x24xi32> to vector<16x24xf32>
    %40 = arith.truncf %39 : vector<16x24xf32> to vector<16x24xbf16>
    %c0_19 = arith.constant 0 : index
    %c0_20 = arith.constant 0 : index
    %41 = vector.load %arg29[%c0_19, %c0_20] : memref<16x128xbf16, #tpu.memory_space<vmem>>, vector<16x128xbf16>
    %cst_21 = arith.constant dense<0.000000e+00> : vector<24x128xf32>
    %42 = tpu.matmul %28, %41, %cst_21 {dimension_numbers = #tpu.dot_dimension_numbers<[1], [0], [0], [1], [0, 0, 1, 1], [], []>} : vector<24x16xbf16>, vector<16x128xbf16>, vector<24x128xf32> -> vector<24x128xf32>
    %c0_22 = arith.constant 0 : index
    %c0_23 = arith.constant 0 : index
    %43 = vector.load %arg28[%c0_22, %c0_23] : memref<16x128xbf16, #tpu.memory_space<vmem>>, vector<16x128xbf16>
    %cst_24 = arith.constant dense<0.000000e+00> : vector<24x128xf32>
    %44 = tpu.matmul %22, %43, %cst_24 {dimension_numbers = #tpu.dot_dimension_numbers<[1], [0], [0], [1], [0, 0, 1, 1], [], []>} : vector<24x16xbf16>, vector<16x128xbf16>, vector<24x128xf32> -> vector<24x128xf32>
    %45 = arith.mulf %42, %16 : vector<24x128xf32>
    %46 = arith.truncf %45 : vector<24x128xf32> to vector<24x128xbf16>
    %47 = arith.mulf %44, %16 : vector<24x128xf32>
    %48 = arith.truncf %47 : vector<24x128xf32> to vector<24x128xbf16>
    %c0_25 = arith.constant 0 : index
    %c0_26 = arith.constant 0 : index
    %49 = vector.load %arg31[%c0_25, %c0_26] : memref<16x128xf32, #tpu.memory_space<vmem>>, vector<16x128xf32>
    %cst_27 = arith.constant dense<0.000000e+00> : vector<16x128xf32>
    %50 = tpu.matmul %34, %46, %cst_27 {dimension_numbers = #tpu.dot_dimension_numbers<[1], [0], [0], [1], [0, 0, 1, 1], [], []>} : vector<16x24xbf16>, vector<24x128xbf16>, vector<16x128xf32> -> vector<16x128xf32>
    %51 = arith.addf %49, %50 : vector<16x128xf32>
    %c0_28 = arith.constant 0 : index
    %c0_29 = arith.constant 0 : index
    %52 = vector.load %arg31[%c0_28, %c0_29] : memref<16x128xf32, #tpu.memory_space<vmem>>, vector<16x128xf32>
    tpu.vector_store %arg31[%c0_28, %c0_29], %51 {strides = array<i32>} : memref<16x128xf32, #tpu.memory_space<vmem>>, vector<16x128xf32>,
    %c0_30 = arith.constant 0 : index
    %c0_31 = arith.constant 0 : index
    %53 = vector.load %arg32[%c0_30, %c0_31] : memref<16x128xf32, #tpu.memory_space<vmem>>, vector<16x128xf32>
    %cst_32 = arith.constant dense<0.000000e+00> : vector<16x128xf32>
    %54 = tpu.matmul %40, %48, %cst_32 {dimension_numbers = #tpu.dot_dimension_numbers<[1], [0], [0], [1], [0, 0, 1, 1], [], []>} : vector<16x24xbf16>, vector<24x128xbf16>, vector<16x128xf32> -> vector<16x128xf32>
    %55 = arith.addf %53, %54 : vector<16x128xf32>
    %c0_33 = arith.constant 0 : index
    %c0_34 = arith.constant 0 : index
    %56 = vector.load %arg32[%c0_33, %c0_34] : memref<16x128xf32, #tpu.memory_space<vmem>>, vector<16x128xf32>
    tpu.vector_store %arg32[%c0_33, %c0_34], %55 {strides = array<i32>} : memref<16x128xf32, #tpu.memory_space<vmem>>, vector<16x128xf32>,
    %c0_35 = arith.constant 0 : index
    %c0_36 = arith.constant 0 : index
    %c0_37 = arith.constant 0 : index
    %57 = vector.load %arg17[%c0_35, %c0_36, %c0_37] : memref<1x128x128xbf16, #tpu.memory_space<vmem>>, vector<1x128x128xbf16>
    %58 = vector.shape_cast %57 : vector<1x128x128xbf16> to vector<128x128xbf16>
    %c0_38 = arith.constant 0 : index
    %c0_39 = arith.constant 0 : index
    %c0_40 = arith.constant 0 : index
    %59 = vector.load %arg19[%c0_38, %c0_39, %c0_40] : memref<1x128x128xbf16, #tpu.memory_space<vmem>>, vector<1x128x128xbf16>
    %60 = vector.shape_cast %59 : vector<1x128x128xbf16> to vector<128x128xbf16>
    %c0_41 = arith.constant 0 : index
    %c0_42 = arith.constant 0 : index
    %61 = vector.load %arg28[%c0_41, %c0_42] : memref<16x128xbf16, #tpu.memory_space<vmem>>, vector<16x128xbf16>
    %62 = arith.extf %61 : vector<16x128xbf16> to vector<16x128xf32>
    %c0_43 = arith.constant 0 : index
    %c0_44 = arith.constant 0 : index
    %63 = vector.load %arg31[%c0_43, %c0_44] : memref<16x128xf32, #tpu.memory_space<vmem>>, vector<16x128xf32>
    %64 = arith.addf %62, %63 : vector<16x128xf32>
    %65 = arith.truncf %64 : vector<16x128xf32> to vector<16x128xbf16>
    %c0_45 = arith.constant 0 : index
    %c0_46 = arith.constant 0 : index
    %66 = vector.load %arg29[%c0_45, %c0_46] : memref<16x128xbf16, #tpu.memory_space<vmem>>, vector<16x128xbf16>
    %67 = arith.extf %66 : vector<16x128xbf16> to vector<16x128xf32>
    %c0_47 = arith.constant 0 : index
    %c0_48 = arith.constant 0 : index
    %68 = vector.load %arg32[%c0_47, %c0_48] : memref<16x128xf32, #tpu.memory_space<vmem>>, vector<16x128xf32>
    %69 = arith.addf %67, %68 : vector<16x128xf32>
    %70 = arith.truncf %69 : vector<16x128xf32> to vector<16x128xbf16>
    %cst_49 = arith.constant dense<0.000000e+00> : vector<16x128xf32>
    %71 = tpu.matmul %65, %58, %cst_49 {dimension_numbers = #tpu.dot_dimension_numbers<[1], [0], [0], [1], [0, 0, 1, 1], [], []>} : vector<16x128xbf16>, vector<128x128xbf16>, vector<16x128xf32> -> vector<16x128xf32>
    %c0_50 = arith.constant 0 : index
    %c0_51 = arith.constant 0 : index
    %c0_52 = arith.constant 0 : index
    %72 = vector.load %arg18[%c0_50, %c0_51, %c0_52] : memref<1x1x128xf32, #tpu.memory_space<vmem>>, vector<1x1x128xf32>
    %73 = vector.shape_cast %72 : vector<1x1x128xf32> to vector<1x128xf32>
    %74 = vector.broadcast %73 : vector<1x128xf32> to vector<16x128xf32>
    %75 = arith.addf %71, %74 : vector<16x128xf32>
    %cst_53 = arith.constant 0.000000e+00 : f32
    %76 = vector.broadcast %cst_53 : f32 to vector<16x128xf32>
    %77 = arith.maximumf %75, %76 : vector<16x128xf32>
    %78 = arith.truncf %77 : vector<16x128xf32> to vector<16x128xbf16>
    %cst_54 = arith.constant dense<0.000000e+00> : vector<16x128xf32>
    %79 = tpu.matmul %70, %60, %cst_54 {dimension_numbers = #tpu.dot_dimension_numbers<[1], [0], [0], [1], [0, 0, 1, 1], [], []>} : vector<16x128xbf16>, vector<128x128xbf16>, vector<16x128xf32> -> vector<16x128xf32>
    %c0_55 = arith.constant 0 : index
    %c0_56 = arith.constant 0 : index
    %c0_57 = arith.constant 0 : index
    %80 = vector.load %arg20[%c0_55, %c0_56, %c0_57] : memref<1x1x128xf32, #tpu.memory_space<vmem>>, vector<1x1x128xf32>
    %81 = vector.shape_cast %80 : vector<1x1x128xf32> to vector<1x128xf32>
    %82 = vector.broadcast %81 : vector<1x128xf32> to vector<16x128xf32>
    %83 = arith.addf %79, %82 : vector<16x128xf32>
    %cst_58 = arith.constant 0.000000e+00 : f32
    %84 = vector.broadcast %cst_58 : f32 to vector<16x128xf32>
    %85 = arith.maximumf %83, %84 : vector<16x128xf32>
    %86 = arith.truncf %85 : vector<16x128xf32> to vector<16x128xbf16>
    %c0_59 = arith.constant 0 : index
    %c0_60 = arith.constant 0 : index
    %87 = vector.load %arg28[%c0_59, %c0_60] : memref<16x128xbf16, #tpu.memory_space<vmem>>, vector<16x128xbf16>
    tpu.vector_store %arg28[%c0_59, %c0_60], %78 {strides = array<i32>} : memref<16x128xbf16, #tpu.memory_space<vmem>>, vector<16x128xbf16>,
    %c0_61 = arith.constant 0 : index
    %c0_62 = arith.constant 0 : index
    %88 = vector.load %arg29[%c0_61, %c0_62] : memref<16x128xbf16, #tpu.memory_space<vmem>>, vector<16x128xbf16>
    tpu.vector_store %arg29[%c0_61, %c0_62], %86 {strides = array<i32>} : memref<16x128xbf16, #tpu.memory_space<vmem>>, vector<16x128xbf16>,
    %89 = tpu.iota {dimensions = array<i32: 0>} : vector<8x16xi32>
    %c0_63 = arith.constant 0 : index
    %c0_64 = arith.constant 0 : index
    %90 = vector.load %arg5[%c0_63, %c0_64] : memref<1x16xi32, #tpu.memory_space<vmem>>, vector<1x16xi32>
    %91 = vector.broadcast %90 : vector<1x16xi32> to vector<8x16xi32>
    %92 = arith.cmpi eq, %89, %91 : vector<8x16xi32>
    %93 = arith.extui %92 : vector<8x16xi1> to vector<8x16xi32>
    %94 = arith.sitofp %93 : vector<8x16xi32> to vector<8x16xf32>
    %95 = arith.truncf %94 : vector<8x16xf32> to vector<8x16xbf16>
    %96 = tpu.iota {dimensions = array<i32: 0>} : vector<8x16xi32>
    %c0_65 = arith.constant 0 : index
    %c0_66 = arith.constant 0 : index
    %97 = vector.load %arg6[%c0_65, %c0_66] : memref<1x16xi32, #tpu.memory_space<vmem>>, vector<1x16xi32>
    %98 = vector.broadcast %97 : vector<1x16xi32> to vector<8x16xi32>
    %99 = arith.cmpi eq, %96, %98 : vector<8x16xi32>
    %100 = arith.extui %99 : vector<8x16xi1> to vector<8x16xi32>
    %101 = arith.sitofp %100 : vector<8x16xi32> to vector<8x16xf32>
    %102 = arith.truncf %101 : vector<8x16xf32> to vector<8x16xbf16>
    %cst_67 = arith.constant dense<0.000000e+00> : vector<8x128xf32>
    %103 = tpu.matmul %95, %78, %cst_67 {dimension_numbers = #tpu.dot_dimension_numbers<[1], [0], [0], [1], [0, 0, 1, 1], [], []>} : vector<8x16xbf16>, vector<16x128xbf16>, vector<8x128xf32> -> vector<8x128xf32>
    %104 = arith.index_cast %arg0 : i32 to index
    %c0_68 = arith.constant 0 : index
    %c0_69 = arith.constant 0 : index
    %105 = vector.load %arg33[%104, %c0_68, %c0_69] : memref<2x8x128xf32, #tpu.memory_space<vmem>>, vector<1x8x128xf32>
    %106 = vector.shape_cast %105 : vector<1x8x128xf32> to vector<8x128xf32>
    %107 = vector.shape_cast %103 : vector<8x128xf32> to vector<1x8x128xf32>
    tpu.vector_store %arg33[%104, %c0_68, %c0_69], %107 {strides = array<i32>} : memref<2x8x128xf32, #tpu.memory_space<vmem>>, vector<1x8x128xf32>,
    %cst_70 = arith.constant dense<0.000000e+00> : vector<8x128xf32>
    %108 = tpu.matmul %102, %86, %cst_70 {dimension_numbers = #tpu.dot_dimension_numbers<[1], [0], [0], [1], [0, 0, 1, 1], [], []>} : vector<8x16xbf16>, vector<16x128xbf16>, vector<8x128xf32> -> vector<8x128xf32>
    %109 = arith.index_cast %arg0 : i32 to index
    %c0_71 = arith.constant 0 : index
    %c0_72 = arith.constant 0 : index
    %110 = vector.load %arg34[%109, %c0_71, %c0_72] : memref<2x8x128xf32, #tpu.memory_space<vmem>>, vector<1x8x128xf32>
    %111 = vector.shape_cast %110 : vector<1x8x128xf32> to vector<8x128xf32>
    %112 = vector.shape_cast %108 : vector<8x128xf32> to vector<1x8x128xf32>
    tpu.vector_store %arg34[%109, %c0_71, %c0_72], %112 {strides = array<i32>} : memref<2x8x128xf32, #tpu.memory_space<vmem>>, vector<1x8x128xf32>,
    %c1_i32 = arith.constant 1 : i32
    %113 = arith.cmpi eq, %arg0, %c1_i32 : i32
    %114 = arith.extui %113 : i1 to i32
    %c0_i32_73 = arith.constant 0 : i32
    %115 = arith.cmpi ne, %114, %c0_i32_73 : i32
    scf.if %115 {
      %c0_74 = arith.constant 0 : index
      %c0_75 = arith.constant 0 : index
      %116 = vector.load %arg10[%c0_74, %c0_75] : memref<8x8xf32, #tpu.memory_space<vmem>>, vector<8x8xf32>
      %c0_76 = arith.constant 0 : index
      %c0_77 = arith.constant 0 : index
      %117 = vector.load %arg21[%c0_76, %c0_77] : memref<8x8xf32, #tpu.memory_space<vmem>>, vector<8x8xf32>
      %cst_78 = arith.constant dense<0.000000e+00> : vector<8x8xf32>
      %118 = tpu.matmul %116, %117, %cst_78 {dimension_numbers = #tpu.dot_dimension_numbers<[1], [0], [0], [1], [0, 0, 1, 1], [], []>} : vector<8x8xf32>, vector<8x8xf32>, vector<8x8xf32> -> vector<8x8xf32>
      %c0_79 = arith.constant 0 : index
      %c0_80 = arith.constant 0 : index
      %119 = vector.load %arg22[%c0_79, %c0_80] : memref<1x8xf32, #tpu.memory_space<vmem>>, vector<1x8xf32>
      %120 = vector.broadcast %119 : vector<1x8xf32> to vector<8x8xf32>
      %121 = arith.addf %118, %120 : vector<8x8xf32>
      %c0_81 = arith.constant 0 : index
      %c0_82 = arith.constant 0 : index
      %122 = vector.load %arg25[%c0_81, %c0_82] : memref<1x8xf32, #tpu.memory_space<vmem>>, vector<1x8xf32>
      %123 = vector.broadcast %122 : vector<1x8xf32> to vector<8x8xf32>
      %124 = arith.mulf %121, %123 : vector<8x8xf32>
      %cst_83 = arith.constant dense<0.000000e+00> : vector<8xf32>
      %125 = vector.multi_reduction <add>, %124, %cst_83 [1] : vector<8x8xf32> to vector<8xf32>
      %126 = vector.shape_cast %125 : vector<8xf32> to vector<8x1xf32>
      %c0_84 = arith.constant 0 : index
      %c0_85 = arith.constant 0 : index
      %c0_86 = arith.constant 0 : index
      %127 = vector.load %arg33[%c0_84, %c0_85, %c0_86] : memref<2x8x128xf32, #tpu.memory_space<vmem>>, vector<1x8x128xf32>
      %128 = vector.shape_cast %127 : vector<1x8x128xf32> to vector<8x128xf32>
      %c0_87 = arith.constant 0 : index
      %c0_88 = arith.constant 0 : index
      %c0_89 = arith.constant 0 : index
      %129 = vector.load %arg23[%c0_87, %c0_88, %c0_89] : memref<2x1x128xf32, #tpu.memory_space<vmem>>, vector<1x1x128xf32>
      %130 = vector.shape_cast %129 : vector<1x1x128xf32> to vector<1x128xf32>
      %131 = vector.broadcast %130 : vector<1x128xf32> to vector<8x128xf32>
      %132 = arith.mulf %128, %131 : vector<8x128xf32>
      %cst_90 = arith.constant dense<0.000000e+00> : vector<8xf32>
      %133 = vector.multi_reduction <add>, %132, %cst_90 [1] : vector<8x128xf32> to vector<8xf32>
      %134 = vector.shape_cast %133 : vector<8xf32> to vector<8x1xf32>
      %135 = arith.addf %126, %134 : vector<8x1xf32>
      %c0_91 = arith.constant 0 : index
      %c0_92 = arith.constant 0 : index
      %c0_93 = arith.constant 0 : index
      %136 = vector.load %arg34[%c0_91, %c0_92, %c0_93] : memref<2x8x128xf32, #tpu.memory_space<vmem>>, vector<1x8x128xf32>
      %137 = vector.shape_cast %136 : vector<1x8x128xf32> to vector<8x128xf32>
      %c0_94 = arith.constant 0 : index
      %c0_95 = arith.constant 0 : index
      %c0_96 = arith.constant 0 : index
      %138 = vector.load %arg24[%c0_94, %c0_95, %c0_96] : memref<2x1x128xf32, #tpu.memory_space<vmem>>, vector<1x1x128xf32>
      %139 = vector.shape_cast %138 : vector<1x1x128xf32> to vector<1x128xf32>
      %140 = vector.broadcast %139 : vector<1x128xf32> to vector<8x128xf32>
      %141 = arith.mulf %137, %140 : vector<8x128xf32>
      %cst_97 = arith.constant dense<0.000000e+00> : vector<8xf32>
      %142 = vector.multi_reduction <add>, %141, %cst_97 [1] : vector<8x128xf32> to vector<8xf32>
      %143 = vector.shape_cast %142 : vector<8xf32> to vector<8x1xf32>
      %144 = arith.addf %135, %143 : vector<8x1xf32>
      %c1 = arith.constant 1 : index
      %c0_98 = arith.constant 0 : index
      %c0_99 = arith.constant 0 : index
      %145 = vector.load %arg33[%c1, %c0_98, %c0_99] : memref<2x8x128xf32, #tpu.memory_space<vmem>>, vector<1x8x128xf32>
      %146 = vector.shape_cast %145 : vector<1x8x128xf32> to vector<8x128xf32>
      %c1_100 = arith.constant 1 : index
      %c0_101 = arith.constant 0 : index
      %c0_102 = arith.constant 0 : index
      %147 = vector.load %arg23[%c1_100, %c0_101, %c0_102] : memref<2x1x128xf32, #tpu.memory_space<vmem>>, vector<1x1x128xf32>
      %148 = vector.shape_cast %147 : vector<1x1x128xf32> to vector<1x128xf32>
      %149 = vector.broadcast %148 : vector<1x128xf32> to vector<8x128xf32>
      %150 = arith.mulf %146, %149 : vector<8x128xf32>
      %cst_103 = arith.constant dense<0.000000e+00> : vector<8xf32>
      %151 = vector.multi_reduction <add>, %150, %cst_103 [1] : vector<8x128xf32> to vector<8xf32>
      %152 = vector.shape_cast %151 : vector<8xf32> to vector<8x1xf32>
      %153 = arith.addf %144, %152 : vector<8x1xf32>
      %c1_104 = arith.constant 1 : index
      %c0_105 = arith.constant 0 : index
      %c0_106 = arith.constant 0 : index
      %154 = vector.load %arg34[%c1_104, %c0_105, %c0_106] : memref<2x8x128xf32, #tpu.memory_space<vmem>>, vector<1x8x128xf32>
      %155 = vector.shape_cast %154 : vector<1x8x128xf32> to vector<8x128xf32>
      %c1_107 = arith.constant 1 : index
      %c0_108 = arith.constant 0 : index
      %c0_109 = arith.constant 0 : index
      %156 = vector.load %arg24[%c1_107, %c0_108, %c0_109] : memref<2x1x128xf32, #tpu.memory_space<vmem>>, vector<1x1x128xf32>
      %157 = vector.shape_cast %156 : vector<1x1x128xf32> to vector<1x128xf32>
      %158 = vector.broadcast %157 : vector<1x128xf32> to vector<8x128xf32>
      %159 = arith.mulf %155, %158 : vector<8x128xf32>
      %cst_110 = arith.constant dense<0.000000e+00> : vector<8xf32>
      %160 = vector.multi_reduction <add>, %159, %cst_110 [1] : vector<8x128xf32> to vector<8xf32>
      %161 = vector.shape_cast %160 : vector<8xf32> to vector<8x1xf32>
      %162 = arith.addf %153, %161 : vector<8x1xf32>
      %c0_111 = arith.constant 0 : index
      %c0_112 = arith.constant 0 : index
      %163 = vector.load %arg26[%c0_111, %c0_112] : memref<1x1xf32, #tpu.memory_space<vmem>>, vector<1x1xf32>
      %164 = vector.broadcast %163 : vector<1x1xf32> to vector<8x1xf32>
      %165 = arith.addf %162, %164 : vector<8x1xf32>
      %166 = vector.shape_cast %165 : vector<8x1xf32> to vector<8x1xf32>
      %167 = vector.broadcast %166 : vector<8x1xf32> to vector<8x128xf32>
      %c0_113 = arith.constant 0 : index
      %c0_114 = arith.constant 0 : index
      %168 = vector.load %arg27[%c0_113, %c0_114] : memref<8x128xf32, #tpu.memory_space<vmem>>, vector<8x128xf32>
      tpu.vector_store %arg27[%c0_113, %c0_114], %167 {strides = array<i32>} : memref<8x128xf32, #tpu.memory_space<vmem>>, vector<8x128xf32>,
    } else {
    }
    return
  }
  func.func @transform_0(%arg0: i32) -> (i32, i32, i32) {
    %c0_i32 = arith.constant 0 : i32
    %c0_i32_0 = arith.constant 0 : i32
    %c0_i32_1 = arith.constant 0 : i32
    %c0_i32_2 = arith.constant 0 : i32
    return %c0_i32, %c0_i32_0, %c0_i32_1 : i32, i32, i32
  }
  func.func @transform_1(%arg0: i32) -> (i32, i32, i32) {
    %c0_i32 = arith.constant 0 : i32
    %c0_i32_0 = arith.constant 0 : i32
    %c0_i32_1 = arith.constant 0 : i32
    %c0_i32_2 = arith.constant 0 : i32
    return %c0_i32, %c0_i32_0, %c0_i32_1 : i32, i32, i32
  }
  func.func @transform_2(%arg0: i32) -> (i32, i32, i32) {
    %c0_i32 = arith.constant 0 : i32
    %c0_i32_0 = arith.constant 0 : i32
    %c0_i32_1 = arith.constant 0 : i32
    %c0_i32_2 = arith.constant 0 : i32
    return %c0_i32, %c0_i32_0, %c0_i32_1 : i32, i32, i32
  }
  func.func @transform_3(%arg0: i32) -> (i32, i32, i32) {
    %c0_i32 = arith.constant 0 : i32
    %c0_i32_0 = arith.constant 0 : i32
    %c0_i32_1 = arith.constant 0 : i32
    %c0_i32_2 = arith.constant 0 : i32
    return %c0_i32, %c0_i32_0, %c0_i32_1 : i32, i32, i32
  }
  func.func @transform_4(%arg0: i32) -> (i32, i32) {
    %c0_i32 = arith.constant 0 : i32
    %c0_i32_0 = arith.constant 0 : i32
    %c0_i32_1 = arith.constant 0 : i32
    return %c0_i32, %c0_i32_0 : i32, i32
  }
  func.func @transform_5(%arg0: i32) -> (i32, i32) {
    %c0_i32 = arith.constant 0 : i32
    %c0_i32_0 = arith.constant 0 : i32
    %c0_i32_1 = arith.constant 0 : i32
    return %c0_i32, %c0_i32_0 : i32, i32
  }
  func.func @transform_6(%arg0: i32) -> (i32, i32) {
    %c0_i32 = arith.constant 0 : i32
    %c0_i32_0 = arith.constant 0 : i32
    %c0_i32_1 = arith.constant 0 : i32
    return %c0_i32, %c0_i32_0 : i32, i32
  }
  func.func @transform_7(%arg0: i32) -> (i32, i32) {
    %c0_i32 = arith.constant 0 : i32
    %c0_i32_0 = arith.constant 0 : i32
    %c0_i32_1 = arith.constant 0 : i32
    return %c0_i32, %c0_i32_0 : i32, i32
  }
  func.func @transform_8(%arg0: i32) -> (i32, i32) {
    %c0_i32 = arith.constant 0 : i32
    %c0_i32_0 = arith.constant 0 : i32
    %c0_i32_1 = arith.constant 0 : i32
    return %c0_i32, %c0_i32_0 : i32, i32
  }
  func.func @transform_9(%arg0: i32) -> (i32, i32) {
    %c0_i32 = arith.constant 0 : i32
    %c0_i32_0 = arith.constant 0 : i32
    %c0_i32_1 = arith.constant 0 : i32
    return %c0_i32, %c0_i32_0 : i32, i32
  }
  func.func @transform_10(%arg0: i32) -> (i32, i32) {
    %c0_i32 = arith.constant 0 : i32
    %c0_i32_0 = arith.constant 0 : i32
    %c0_i32_1 = arith.constant 0 : i32
    return %c0_i32, %c0_i32_0 : i32, i32
  }
  func.func @transform_11(%arg0: i32) -> (i32, i32) {
    %c0_i32 = arith.constant 0 : i32
    %c0_i32_0 = arith.constant 0 : i32
    %c0_i32_1 = arith.constant 0 : i32
    return %c0_i32, %c0_i32_0 : i32, i32
  }
  func.func @transform_12(%arg0: i32) -> (i32, i32) {
    %c0_i32 = arith.constant 0 : i32
    %c0_i32_0 = arith.constant 0 : i32
    %c0_i32_1 = arith.constant 0 : i32
    return %c0_i32, %c0_i32_0 : i32, i32
  }
  func.func @transform_13(%arg0: i32) -> (i32, i32) {
    %c0_i32 = arith.constant 0 : i32
    %c0_i32_0 = arith.constant 0 : i32
    %c0_i32_1 = arith.constant 0 : i32
    return %c0_i32, %c0_i32_0 : i32, i32
  }
  func.func @transform_14(%arg0: i32) -> (i32, i32) {
    %c0_i32 = arith.constant 0 : i32
    %c0_i32_0 = arith.constant 0 : i32
    %c0_i32_1 = arith.constant 0 : i32
    return %c0_i32, %c0_i32_0 : i32, i32
  }
  func.func @transform_15(%arg0: i32) -> (i32, i32) {
    %c0_i32 = arith.constant 0 : i32
    %c0_i32_0 = arith.constant 0 : i32
    %c0_i32_1 = arith.constant 0 : i32
    return %c0_i32, %c0_i32_0 : i32, i32
  }
  func.func @transform_16(%arg0: i32) -> (i32, i32, i32) {
    %c0_i32 = arith.constant 0 : i32
    %c0_i32_0 = arith.constant 0 : i32
    %c0_i32_1 = arith.constant 0 : i32
    return %arg0, %c0_i32, %c0_i32_0 : i32, i32, i32
  }
  func.func @transform_17(%arg0: i32) -> (i32, i32, i32) {
    %c0_i32 = arith.constant 0 : i32
    %c0_i32_0 = arith.constant 0 : i32
    %c0_i32_1 = arith.constant 0 : i32
    return %arg0, %c0_i32, %c0_i32_0 : i32, i32, i32
  }
  func.func @transform_18(%arg0: i32) -> (i32, i32, i32) {
    %c0_i32 = arith.constant 0 : i32
    %c0_i32_0 = arith.constant 0 : i32
    %c0_i32_1 = arith.constant 0 : i32
    return %arg0, %c0_i32, %c0_i32_0 : i32, i32, i32
  }
  func.func @transform_19(%arg0: i32) -> (i32, i32, i32) {
    %c0_i32 = arith.constant 0 : i32
    %c0_i32_0 = arith.constant 0 : i32
    %c0_i32_1 = arith.constant 0 : i32
    return %arg0, %c0_i32, %c0_i32_0 : i32, i32, i32
  }
  func.func @transform_20(%arg0: i32) -> (i32, i32) {
    %c0_i32 = arith.constant 0 : i32
    %c0_i32_0 = arith.constant 0 : i32
    %c0_i32_1 = arith.constant 0 : i32
    return %c0_i32, %c0_i32_0 : i32, i32
  }
  func.func @transform_21(%arg0: i32) -> (i32, i32) {
    %c0_i32 = arith.constant 0 : i32
    %c0_i32_0 = arith.constant 0 : i32
    %c0_i32_1 = arith.constant 0 : i32
    return %c0_i32, %c0_i32_0 : i32, i32
  }
  func.func @transform_22(%arg0: i32) -> (i32, i32, i32) {
    %c0_i32 = arith.constant 0 : i32
    %c0_i32_0 = arith.constant 0 : i32
    %c0_i32_1 = arith.constant 0 : i32
    %c0_i32_2 = arith.constant 0 : i32
    return %c0_i32, %c0_i32_0, %c0_i32_1 : i32, i32, i32
  }
  func.func @transform_23(%arg0: i32) -> (i32, i32, i32) {
    %c0_i32 = arith.constant 0 : i32
    %c0_i32_0 = arith.constant 0 : i32
    %c0_i32_1 = arith.constant 0 : i32
    %c0_i32_2 = arith.constant 0 : i32
    return %c0_i32, %c0_i32_0, %c0_i32_1 : i32, i32, i32
  }
  func.func @transform_24(%arg0: i32) -> (i32, i32) {
    %c0_i32 = arith.constant 0 : i32
    %c0_i32_0 = arith.constant 0 : i32
    %c0_i32_1 = arith.constant 0 : i32
    return %c0_i32, %c0_i32_0 : i32, i32
  }
  func.func @transform_25(%arg0: i32) -> (i32, i32) {
    %c0_i32 = arith.constant 0 : i32
    %c0_i32_0 = arith.constant 0 : i32
    %c0_i32_1 = arith.constant 0 : i32
    return %c0_i32, %c0_i32_0 : i32, i32
  }
  func.func @transform_26(%arg0: i32) -> (i32, i32) {
    %c0_i32 = arith.constant 0 : i32
    %c0_i32_0 = arith.constant 0 : i32
    %c0_i32_1 = arith.constant 0 : i32
    return %c0_i32, %c0_i32_0 : i32, i32
  }
}

</mosaic_0001>

<llo_original>
// kernel: tpu_custom_call.1
$region0: #{tpu_custom_call.1}
  #allocation0 [shape = 'u32[]', space=smem, size = 0x4, offset = 0x4, fixed_abs, tag = 'smem constant byte address 0x4 - core index']
  #allocation1 [shape = 'u32[72,128]{1,0:T(1,128)}', space=vmem, size = 0x9000, scoped, tag = 'internal scratch']
  #allocation2 [shape = 'bf16[16,128]{1,0:T(8,128)(2,1)}', space=vmem, size = 0x1000, scoped, tag = 'scratch operand']
  #allocation3 [shape = 'bf16[16,128]{1,0:T(8,128)(2,1)}', space=vmem, size = 0x1000, scoped, tag = 'scratch operand']
  #allocation4 [shape = 'bf16[24,128]{1,0:T(8,128)(2,1)}', space=vmem, size = 0x1800, scoped, tag = 'scratch operand']
  #allocation5 [shape = 'f32[16,128]{1,0:T(8,128)}', space=vmem, size = 0x2000, scoped, tag = 'scratch operand']
  #allocation6 [shape = 'f32[16,128]{1,0:T(8,128)}', space=vmem, size = 0x2000, scoped, tag = 'scratch operand']
  #allocation7 [shape = 'f32[2,8,128]{2,1,0:T(8,128)}', space=vmem, size = 0x2000, scoped, tag = 'scratch operand']
  #allocation8 [shape = 'f32[2,8,128]{2,1,0:T(8,128)}', space=vmem, size = 0x2000, scoped, tag = 'scratch operand']
  #allocation9 [shape = 'f32[1,1]{1,0:T(1,128)S(1)}', space=vmem, size = 0x200, scoped, tag = 'scoped memory for tpu_custom_call.1']
  %s0 = inlined_call_operand.vmem [shape: s32[1,1,24], index: 0, kind: input, shape index: {}]
  %s1 = inlined_call_operand.vmem [shape: s32[1,24,1], index: 1, kind: input, shape index: {}]
  %s2 = inlined_call_operand.vmem [shape: s32[1,1,24], index: 2, kind: input, shape index: {}]
  %s3 = inlined_call_operand.vmem [shape: s32[1,24,1], index: 3, kind: input, shape index: {}]
  %s4 = inlined_call_operand.vmem [shape: s32[1,16], index: 4, kind: input, shape index: {}]
  %s5 = inlined_call_operand.vmem [shape: s32[1,16], index: 5, kind: input, shape index: {}]
  %s6 = inlined_call_operand.vmem [shape: bf16[16,8], index: 6, kind: input, shape index: {}]
  %s7 = inlined_call_operand.vmem [shape: bf16[16,8], index: 7, kind: input, shape index: {}]
  %s8 = inlined_call_operand.vmem [shape: bf16[24,8], index: 8, kind: input, shape index: {}]
  %s9 = inlined_call_operand.vmem [shape: f32[8,8], index: 9, kind: input, shape index: {}]
  %s10 = inlined_call_operand.vmem [shape: bf16[8,128], index: 10, kind: input, shape index: {}]
  %s11 = inlined_call_operand.vmem [shape: f32[1,128], index: 11, kind: input, shape index: {}]
  %s12 = inlined_call_operand.vmem [shape: bf16[8,128], index: 12, kind: input, shape index: {}]
  %s13 = inlined_call_operand.vmem [shape: f32[1,128], index: 13, kind: input, shape index: {}]
  %s14 = inlined_call_operand.vmem [shape: bf16[8,128], index: 14, kind: input, shape index: {}]
  %s15 = inlined_call_operand.vmem [shape: f32[1,128], index: 15, kind: input, shape index: {}]
  %s16 = inlined_call_operand.hbm [shape: bf16[2,128,128], index: 16, kind: input, shape index: {}]
  %s17 = inlined_call_operand.vmem [shape: f32[2,1,128], index: 17, kind: input, shape index: {}]
  %s18 = inlined_call_operand.hbm [shape: bf16[2,128,128], index: 18, kind: input, shape index: {}]
  %s19 = inlined_call_operand.vmem [shape: f32[2,1,128], index: 19, kind: input, shape index: {}]
  %s20 = inlined_call_operand.vmem [shape: f32[8,8], index: 20, kind: input, shape index: {}]
  %s21 = inlined_call_operand.vmem [shape: f32[1,8], index: 21, kind: input, shape index: {}]
  %s22 = inlined_call_operand.vmem [shape: f32[2,1,128], index: 22, kind: input, shape index: {}]
  %s23 = inlined_call_operand.vmem [shape: f32[2,1,128], index: 23, kind: input, shape index: {}]
  %s24 = inlined_call_operand.vmem [shape: f32[1,8], index: 24, kind: input, shape index: {}]
  %s25 = inlined_call_operand.<no memory space> [shape: f32[1,1], index: 25, kind: input, shape index: {}]
  %s26 = inlined_call_operand.hbm [shape: f32[8,128], index: 26, kind: output, shape index: {}]
  %s27 = sld [smem:[#allocation0]]
  $region153: #{tpu_custom_call.1} parent=0
    _
  %s29 = ssub.s32 1, %s27
  %s30 = scalar_select 0, %s29, %s27
  %v31 = vstv %s25
  %32 = vst [vmem:[#allocation9] sm:$0x1] %v31
  $region1: #{tpu_custom_call.1} parent=0
    #allocation10 [shape = 'u8[65536]{0}', space=vmem, size = 0x10000, scoped, tag = 'input window, operand 16']
    #allocation11 [shape = 's32[2]{0}', space=sflag, size = 0x8, scoped, tag = 'scoped memory for tpu_custom_call.1']
    #allocation12 [shape = 's32[2]{0}', space=sflag, size = 0x8, scoped, tag = 'scoped memory for tpu_custom_call.1']
    #allocation13 [shape = 'u8[65536]{0}', space=vmem, size = 0x10000, scoped, tag = 'input window, operand 18']
    #allocation14 [shape = 's32[2]{0}', space=sflag, size = 0x8, scoped, tag = 'scoped memory for tpu_custom_call.1']
    #allocation15 [shape = 'u8[4096]{0}', space=vmem, size = 0x1000, scoped, tag = 'output window, operand 0, single buffered']
    %33 = vsyncpa [#allocation11], 0
    %s34 = scalar_lea.sflag [#allocation11], 1
    %35 = vsyncpa %s34, 0
    %36 = vsyncpa [#allocation14], 0
    %s37 = scalar_lea.sflag [#allocation14], 1
    %38 = vsyncpa %s37, 0
    %39 = vsyncpa [#allocation12], 0
    loop: start=0, step=1, limit=4
    $region2: #{tpu_custom_call.1} parent=1 // loop_pre_header
      _
    $region3: #{tpu_custom_call.1} parent=1 // loop_header
      %s41 = sphi 0, %s45
      %p42 = scmp.ge.s32.totalorder %s41, 4
      %s49 = sphi 0, %s49
      %s51 = sphi 0, %s49
      %s52 = sphi 0, %s51
      %s66 = sphi 0, %s52
      %s70 = sphi 0, %s70
      %s72 = sphi 0, %s70
      %s73 = sphi 0, %s72
      %s87 = sphi 0, %s73
      %s91 = sphi 0, %s91
      %s93 = sphi 0, %s91
      %s94 = sphi 0, %s93
      %s108 = sphi 0, %s94
      %s112 = sphi 0, %s112
      %s114 = sphi 0, %s112
      %s115 = sphi 0, %s114
      %s129 = sphi 0, %s115
      %s133 = sphi 0, %s133
      %s135 = sphi 0, %s133
      %s136 = sphi 0, %s135
      %s150 = sphi 0, %s136
      %s154 = sphi 0, %s154
      %s156 = sphi 0, %s154
      %s157 = sphi 0, %s156
      %s171 = sphi 0, %s157
      %s175 = sphi 0, %s175
      %s177 = sphi 0, %s175
      %s178 = sphi 0, %s177
      %s192 = sphi 0, %s178
      %s196 = sphi 0, %s196
      %s198 = sphi 0, %s196
      %s199 = sphi 0, %s198
      %s213 = sphi 0, %s199
      %s217 = sphi 0, %s217
      %s219 = sphi 0, %s217
      %s220 = sphi 0, %s219
      %s234 = sphi 0, %s220
      %s238 = sphi 0, %s238
      %s240 = sphi 0, %s238
      %s241 = sphi 0, %s240
      %s255 = sphi 0, %s241
      %s259 = sphi 0, %s259
      %s261 = sphi 0, %s259
      %s262 = sphi 0, %s261
      %s276 = sphi 0, %s262
      %s280 = sphi 0, %s280
      %s282 = sphi 0, %s280
      %s283 = sphi 0, %s282
      %s297 = sphi 0, %s283
      %s301 = sphi 0, %s301
      %s303 = sphi 0, %s301
      %s304 = sphi 0, %s303
      %s318 = sphi 0, %s304
      %s322 = sphi 0, %s322
      %s324 = sphi 0, %s322
      %s325 = sphi 0, %s324
      %s339 = sphi 0, %s325
      %s343 = sphi 0, %s343
      %s345 = sphi 0, %s343
      %s346 = sphi 0, %s345
      %s360 = sphi 0, %s346
      %s364 = sphi 0, %s364
      %s366 = sphi 0, %s364
      %s367 = sphi 0, %s366
      %s381 = sphi 0, %s367
      %s387 = sphi 0, %s389
      %s390 = sphi 0, %s387
      %s391 = sphi 0, %s390
      %s407 = sphi 0, %s391
      %s413 = sphi 0, %s415
      %s416 = sphi 0, %s413
      %s417 = sphi 0, %s416
      %s433 = sphi 0, %s417
      %s439 = sphi 0, %s441
      %s442 = sphi 0, %s439
      %s443 = sphi 0, %s442
      %s459 = sphi 0, %s443
      %s465 = sphi 0, %s467
      %s468 = sphi 0, %s465
      %s469 = sphi 0, %s468
      %s485 = sphi 0, %s469
      %s489 = sphi 0, %s489
      %s491 = sphi 0, %s489
      %s492 = sphi 0, %s491
      %s506 = sphi 0, %s492
      %s510 = sphi 0, %s510
      %s512 = sphi 0, %s510
      %s513 = sphi 0, %s512
      %s527 = sphi 0, %s513
      %s531 = sphi 0, %s531
      %s533 = sphi 0, %s531
      %s534 = sphi 0, %s533
      %s548 = sphi 0, %s534
      %s552 = sphi 0, %s552
      %s554 = sphi 0, %s552
      %s555 = sphi 0, %s554
      %s569 = sphi 0, %s555
      %s573 = sphi 0, %s573
      %s575 = sphi 0, %s573
      %s576 = sphi 0, %s575
      %s590 = sphi 0, %s576
      %s594 = sphi 0, %s594
      %s596 = sphi 0, %s594
      %s597 = sphi 0, %s596
      %s611 = sphi 0, %s597
      %s615 = sphi 0, %s615
      %s617 = sphi 0, %s615
      %s618 = sphi 0, %s617
      %s632 = sphi 0, %s618
    $region4: #{tpu_custom_call.1} parent=1 // loop_header_branch
      %44 = sbr.rel (%p42) target = $region8
    $region5: #{tpu_custom_call.1} parent=1 // loop_body
      %s46 = ssub.s32 %s41, 1
      %s47 = ssub.s32 %s41, 2
      %s48 = sadd.s32 %s41, 1
      %s50 = sadd.s32 %s49, 1
      %p53 = scmp.eq.s32.totalorder %s41, 1
      %p54 = scmp.ne.s32.totalorder %s49, %s51
      %p55 = scmp.eq.s32.totalorder %s41, 0
      %p56 = por %p54, %p55
      %p57 = scmp.ne.s32.totalorder %s49, %s51
      %p58 = scmp.eq.s32.totalorder %s46, 1
      %p59 = por %p57, %p58
      %p60 = scmp.ne.s32.totalorder %s51, %s52
      %p61 = scmp.eq.s32.totalorder %s46, 0
      %p62 = por %p60, %p61
      %p63 = scmp.ne.s32.totalorder %s51, %s52
      %p64 = scmp.eq.s32.totalorder %s47, 1
      %p65 = por %p63, %p64
      %p67 = scmp.ne.s32.totalorder %s52, %s66
      %p68 = scmp.eq.s32.totalorder %s47, 0
      %p69 = por %p67, %p68
      %s71 = sadd.s32 %s70, 1
      %p74 = scmp.eq.s32.totalorder %s41, 1
      %p75 = scmp.ne.s32.totalorder %s70, %s72
      %p76 = scmp.eq.s32.totalorder %s41, 0
      %p77 = por %p75, %p76
      %p78 = scmp.ne.s32.totalorder %s70, %s72
      %p79 = scmp.eq.s32.totalorder %s46, 1
      %p80 = por %p78, %p79
      %p81 = scmp.ne.s32.totalorder %s72, %s73
      %p82 = scmp.eq.s32.totalorder %s46, 0
      %p83 = por %p81, %p82
      %p84 = scmp.ne.s32.totalorder %s72, %s73
      %p85 = scmp.eq.s32.totalorder %s47, 1
      %p86 = por %p84, %p85
      %p88 = scmp.ne.s32.totalorder %s73, %s87
      %p89 = scmp.eq.s32.totalorder %s47, 0
      %p90 = por %p88, %p89
      %s92 = sadd.s32 %s91, 1
      %p95 = scmp.eq.s32.totalorder %s41, 1
      %p96 = scmp.ne.s32.totalorder %s91, %s93
      %p97 = scmp.eq.s32.totalorder %s41, 0
      %p98 = por %p96, %p97
      %p99 = scmp.ne.s32.totalorder %s91, %s93
      %p100 = scmp.eq.s32.totalorder %s46, 1
      %p101 = por %p99, %p100
      %p102 = scmp.ne.s32.totalorder %s93, %s94
      %p103 = scmp.eq.s32.totalorder %s46, 0
      %p104 = por %p102, %p103
      %p105 = scmp.ne.s32.totalorder %s93, %s94
      %p106 = scmp.eq.s32.totalorder %s47, 1
      %p107 = por %p105, %p106
      %p109 = scmp.ne.s32.totalorder %s94, %s108
      %p110 = scmp.eq.s32.totalorder %s47, 0
      %p111 = por %p109, %p110
      %s113 = sadd.s32 %s112, 1
      %p116 = scmp.eq.s32.totalorder %s41, 1
      %p117 = scmp.ne.s32.totalorder %s112, %s114
      %p118 = scmp.eq.s32.totalorder %s41, 0
      %p119 = por %p117, %p118
      %p120 = scmp.ne.s32.totalorder %s112, %s114
      %p121 = scmp.eq.s32.totalorder %s46, 1
      %p122 = por %p120, %p121
      %p123 = scmp.ne.s32.totalorder %s114, %s115
      %p124 = scmp.eq.s32.totalorder %s46, 0
      %p125 = por %p123, %p124
      %p126 = scmp.ne.s32.totalorder %s114, %s115
      %p127 = scmp.eq.s32.totalorder %s47, 1
      %p128 = por %p126, %p127
      %p130 = scmp.ne.s32.totalorder %s115, %s129
      %p131 = scmp.eq.s32.totalorder %s47, 0
      %p132 = por %p130, %p131
      %s134 = sadd.s32 %s133, 1
      %p137 = scmp.eq.s32.totalorder %s41, 1
      %p138 = scmp.ne.s32.totalorder %s133, %s135
      %p139 = scmp.eq.s32.totalorder %s41, 0
      %p140 = por %p138, %p139
      %p141 = scmp.ne.s32.totalorder %s133, %s135
      %p142 = scmp.eq.s32.totalorder %s46, 1
      %p143 = por %p141, %p142
      %p144 = scmp.ne.s32.totalorder %s135, %s136
      %p145 = scmp.eq.s32.totalorder %s46, 0
      %p146 = por %p144, %p145
      %p147 = scmp.ne.s32.totalorder %s135, %s136
      %p148 = scmp.eq.s32.totalorder %s47, 1
      %p149 = por %p147, %p148
      %p151 = scmp.ne.s32.totalorder %s136, %s150
      %p152 = scmp.eq.s32.totalorder %s47, 0
      %p153 = por %p151, %p152
      %s155 = sadd.s32 %s154, 1
      %p158 = scmp.eq.s32.totalorder %s41, 1
      %p159 = scmp.ne.s32.totalorder %s154, %s156
      %p160 = scmp.eq.s32.totalorder %s41, 0
      %p161 = por %p159, %p160
      %p162 = scmp.ne.s32.totalorder %s154, %s156
      %p163 = scmp.eq.s32.totalorder %s46, 1
      %p164 = por %p162, %p163
      %p165 = scmp.ne.s32.totalorder %s156, %s157
      %p166 = scmp.eq.s32.totalorder %s46, 0
      %p167 = por %p165, %p166
      %p168 = scmp.ne.s32.totalorder %s156, %s157
      %p169 = scmp.eq.s32.totalorder %s47, 1
      %p170 = por %p168, %p169
      %p172 = scmp.ne.s32.totalorder %s157, %s171
      %p173 = scmp.eq.s32.totalorder %s47, 0
      %p174 = por %p172, %p173
      %s176 = sadd.s32 %s175, 1
      %p179 = scmp.eq.s32.totalorder %s41, 1
      %p180 = scmp.ne.s32.totalorder %s175, %s177
      %p181 = scmp.eq.s32.totalorder %s41, 0
      %p182 = por %p180, %p181
      %p183 = scmp.ne.s32.totalorder %s175, %s177
      %p184 = scmp.eq.s32.totalorder %s46, 1
      %p185 = por %p183, %p184
      %p186 = scmp.ne.s32.totalorder %s177, %s178
      %p187 = scmp.eq.s32.totalorder %s46, 0
      %p188 = por %p186, %p187
      %p189 = scmp.ne.s32.totalorder %s177, %s178
      %p190 = scmp.eq.s32.totalorder %s47, 1
      %p191 = por %p189, %p190
      %p193 = scmp.ne.s32.totalorder %s178, %s192
      %p194 = scmp.eq.s32.totalorder %s47, 0
      %p195 = por %p193, %p194
      %s197 = sadd.s32 %s196, 1
      %p200 = scmp.eq.s32.totalorder %s41, 1
      %p201 = scmp.ne.s32.totalorder %s196, %s198
      %p202 = scmp.eq.s32.totalorder %s41, 0
      %p203 = por %p201, %p202
      %p204 = scmp.ne.s32.totalorder %s196, %s198
      %p205 = scmp.eq.s32.totalorder %s46, 1
      %p206 = por %p204, %p205
      %p207 = scmp.ne.s32.totalorder %s198, %s199
      %p208 = scmp.eq.s32.totalorder %s46, 0
      %p209 = por %p207, %p208
      %p210 = scmp.ne.s32.totalorder %s198, %s199
      %p211 = scmp.eq.s32.totalorder %s47, 1
      %p212 = por %p210, %p211
      %p214 = scmp.ne.s32.totalorder %s199, %s213
      %p215 = scmp.eq.s32.totalorder %s47, 0
      %p216 = por %p214, %p215
      %s218 = sadd.s32 %s217, 1
      %p221 = scmp.eq.s32.totalorder %s41, 1
      %p222 = scmp.ne.s32.totalorder %s217, %s219
      %p223 = scmp.eq.s32.totalorder %s41, 0
      %p224 = por %p222, %p223
      %p225 = scmp.ne.s32.totalorder %s217, %s219
      %p226 = scmp.eq.s32.totalorder %s46, 1
      %p227 = por %p225, %p226
      %p228 = scmp.ne.s32.totalorder %s219, %s220
      %p229 = scmp.eq.s32.totalorder %s46, 0
      %p230 = por %p228, %p229
      %p231 = scmp.ne.s32.totalorder %s219, %s220
      %p232 = scmp.eq.s32.totalorder %s47, 1
      %p233 = por %p231, %p232
      %p235 = scmp.ne.s32.totalorder %s220, %s234
      %p236 = scmp.eq.s32.totalorder %s47, 0
      %p237 = por %p235, %p236
      %s239 = sadd.s32 %s238, 1
      %p242 = scmp.eq.s32.totalorder %s41, 1
      %p243 = scmp.ne.s32.totalorder %s238, %s240
      %p244 = scmp.eq.s32.totalorder %s41, 0
      %p245 = por %p243, %p244
      %p246 = scmp.ne.s32.totalorder %s238, %s240
      %p247 = scmp.eq.s32.totalorder %s46, 1
      %p248 = por %p246, %p247
      %p249 = scmp.ne.s32.totalorder %s240, %s241
      %p250 = scmp.eq.s32.totalorder %s46, 0
      %p251 = por %p249, %p250
      %p252 = scmp.ne.s32.totalorder %s240, %s241
      %p253 = scmp.eq.s32.totalorder %s47, 1
      %p254 = por %p252, %p253
      %p256 = scmp.ne.s32.totalorder %s241, %s255
      %p257 = scmp.eq.s32.totalorder %s47, 0
      %p258 = por %p256, %p257
      %s260 = sadd.s32 %s259, 1
      %p263 = scmp.eq.s32.totalorder %s41, 1
      %p264 = scmp.ne.s32.totalorder %s259, %s261
      %p265 = scmp.eq.s32.totalorder %s41, 0
      %p266 = por %p264, %p265
      %p267 = scmp.ne.s32.totalorder %s259, %s261
      %p268 = scmp.eq.s32.totalorder %s46, 1
      %p269 = por %p267, %p268
      %p270 = scmp.ne.s32.totalorder %s261, %s262
      %p271 = scmp.eq.s32.totalorder %s46, 0
      %p272 = por %p270, %p271
      %p273 = scmp.ne.s32.totalorder %s261, %s262
      %p274 = scmp.eq.s32.totalorder %s47, 1
      %p275 = por %p273, %p274
      %p277 = scmp.ne.s32.totalorder %s262, %s276
      %p278 = scmp.eq.s32.totalorder %s47, 0
      %p279 = por %p277, %p278
      %s281 = sadd.s32 %s280, 1
      %p284 = scmp.eq.s32.totalorder %s41, 1
      %p285 = scmp.ne.s32.totalorder %s280, %s282
      %p286 = scmp.eq.s32.totalorder %s41, 0
      %p287 = por %p285, %p286
      %p288 = scmp.ne.s32.totalorder %s280, %s282
      %p289 = scmp.eq.s32.totalorder %s46, 1
      %p290 = por %p288, %p289
      %p291 = scmp.ne.s32.totalorder %s282, %s283
      %p292 = scmp.eq.s32.totalorder %s46, 0
      %p293 = por %p291, %p292
      %p294 = scmp.ne.s32.totalorder %s282, %s283
      %p295 = scmp.eq.s32.totalorder %s47, 1
      %p296 = por %p294, %p295
      %p298 = scmp.ne.s32.totalorder %s283, %s297
      %p299 = scmp.eq.s32.totalorder %s47, 0
      %p300 = por %p298, %p299
      %s302 = sadd.s32 %s301, 1
      %p305 = scmp.eq.s32.totalorder %s41, 1
      %p306 = scmp.ne.s32.totalorder %s301, %s303
      %p307 = scmp.eq.s32.totalorder %s41, 0
      %p308 = por %p306, %p307
      %p309 = scmp.ne.s32.totalorder %s301, %s303
      %p310 = scmp.eq.s32.totalorder %s46, 1
      %p311 = por %p309, %p310
      %p312 = scmp.ne.s32.totalorder %s303, %s304
      %p313 = scmp.eq.s32.totalorder %s46, 0
      %p314 = por %p312, %p313
      %p315 = scmp.ne.s32.totalorder %s303, %s304
      %p316 = scmp.eq.s32.totalorder %s47, 1
      %p317 = por %p315, %p316
      %p319 = scmp.ne.s32.totalorder %s304, %s318
      %p320 = scmp.eq.s32.totalorder %s47, 0
      %p321 = por %p319, %p320
      %s323 = sadd.s32 %s322, 1
      %p326 = scmp.eq.s32.totalorder %s41, 1
      %p327 = scmp.ne.s32.totalorder %s322, %s324
      %p328 = scmp.eq.s32.totalorder %s41, 0
      %p329 = por %p327, %p328
      %p330 = scmp.ne.s32.totalorder %s322, %s324
      %p331 = scmp.eq.s32.totalorder %s46, 1
      %p332 = por %p330, %p331
      %p333 = scmp.ne.s32.totalorder %s324, %s325
      %p334 = scmp.eq.s32.totalorder %s46, 0
      %p335 = por %p333, %p334
      %p336 = scmp.ne.s32.totalorder %s324, %s325
      %p337 = scmp.eq.s32.totalorder %s47, 1
      %p338 = por %p336, %p337
      %p340 = scmp.ne.s32.totalorder %s325, %s339
      %p341 = scmp.eq.s32.totalorder %s47, 0
      %p342 = por %p340, %p341
      %s344 = sadd.s32 %s343, 1
      %p347 = scmp.eq.s32.totalorder %s41, 1
      %p348 = scmp.ne.s32.totalorder %s343, %s345
      %p349 = scmp.eq.s32.totalorder %s41, 0
      %p350 = por %p348, %p349
      %p351 = scmp.ne.s32.totalorder %s343, %s345
      %p352 = scmp.eq.s32.totalorder %s46, 1
      %p353 = por %p351, %p352
      %p354 = scmp.ne.s32.totalorder %s345, %s346
      %p355 = scmp.eq.s32.totalorder %s46, 0
      %p356 = por %p354, %p355
      %p357 = scmp.ne.s32.totalorder %s345, %s346
      %p358 = scmp.eq.s32.totalorder %s47, 1
      %p359 = por %p357, %p358
      %p361 = scmp.ne.s32.totalorder %s346, %s360
      %p362 = scmp.eq.s32.totalorder %s47, 0
      %p363 = por %p361, %p362
      %s365 = sadd.s32 %s364, 1
      %p368 = scmp.eq.s32.totalorder %s41, 1
      %p369 = scmp.ne.s32.totalorder %s364, %s366
      %p370 = scmp.eq.s32.totalorder %s41, 0
      %p371 = por %p369, %p370
      %p372 = scmp.ne.s32.totalorder %s364, %s366
      %p373 = scmp.eq.s32.totalorder %s46, 1
      %p374 = por %p372, %p373
      %p375 = scmp.ne.s32.totalorder %s366, %s367
      %p376 = scmp.eq.s32.totalorder %s46, 0
      %p377 = por %p375, %p376
      %p378 = scmp.ne.s32.totalorder %s366, %s367
      %p379 = scmp.eq.s32.totalorder %s47, 1
      %p380 = por %p378, %p379
      %p382 = scmp.ne.s32.totalorder %s367, %s381
      %p383 = scmp.eq.s32.totalorder %s47, 0
      %p384 = por %p382, %p383
      %s385 = ssub.s32 %s41, %s48
      %p386 = scmp.eq.s32.totalorder %s385, 0
      %s388 = sadd.s32 %s387, 1
      %s389 = scalar_select %p386, %s387, %s388
      %p392 = pneg %p386
      %p393 = scmp.eq.s32.totalorder %s41, 1
      %p394 = por %p392, %p393
      %p395 = scmp.ne.s32.totalorder %s387, %s390
      %p396 = scmp.eq.s32.totalorder %s41, 0
      %p397 = por %p395, %p396
      %p398 = scmp.ne.s32.totalorder %s387, %s390
      %p399 = scmp.eq.s32.totalorder %s46, 1
      %p400 = por %p398, %p399
      %p401 = scmp.ne.s32.totalorder %s390, %s391
      %p402 = scmp.eq.s32.totalorder %s46, 0
      %p403 = por %p401, %p402
      %p404 = scmp.ne.s32.totalorder %s390, %s391
      %p405 = scmp.eq.s32.totalorder %s47, 1
      %p406 = por %p404, %p405
      %p408 = scmp.ne.s32.totalorder %s391, %s407
      %p409 = scmp.eq.s32.totalorder %s47, 0
      %p410 = por %p408, %p409
      %s411 = ssub.s32 %s41, %s48
      %p412 = scmp.eq.s32.totalorder %s411, 0
      %s414 = sadd.s32 %s413, 1
      %s415 = scalar_select %p412, %s413, %s414
      %p418 = pneg %p412
      %p419 = scmp.eq.s32.totalorder %s41, 1
      %p420 = por %p418, %p419
      %p421 = scmp.ne.s32.totalorder %s413, %s416
      %p422 = scmp.eq.s32.totalorder %s41, 0
      %p423 = por %p421, %p422
      %p424 = scmp.ne.s32.totalorder %s413, %s416
      %p425 = scmp.eq.s32.totalorder %s46, 1
      %p426 = por %p424, %p425
      %p427 = scmp.ne.s32.totalorder %s416, %s417
      %p428 = scmp.eq.s32.totalorder %s46, 0
      %p429 = por %p427, %p428
      %p430 = scmp.ne.s32.totalorder %s416, %s417
      %p431 = scmp.eq.s32.totalorder %s47, 1
      %p432 = por %p430, %p431
      %p434 = scmp.ne.s32.totalorder %s417, %s433
      %p435 = scmp.eq.s32.totalorder %s47, 0
      %p436 = por %p434, %p435
      %s437 = ssub.s32 %s41, %s48
      %p438 = scmp.eq.s32.totalorder %s437, 0
      %s440 = sadd.s32 %s439, 1
      %s441 = scalar_select %p438, %s439, %s440
      %p444 = pneg %p438
      %p445 = scmp.eq.s32.totalorder %s41, 1
      %p446 = por %p444, %p445
      %p447 = scmp.ne.s32.totalorder %s439, %s442
      %p448 = scmp.eq.s32.totalorder %s41, 0
      %p449 = por %p447, %p448
      %p450 = scmp.ne.s32.totalorder %s439, %s442
      %p451 = scmp.eq.s32.totalorder %s46, 1
      %p452 = por %p450, %p451
      %p453 = scmp.ne.s32.totalorder %s442, %s443
      %p454 = scmp.eq.s32.totalorder %s46, 0
      %p455 = por %p453, %p454
      %p456 = scmp.ne.s32.totalorder %s442, %s443
      %p457 = scmp.eq.s32.totalorder %s47, 1
      %p458 = por %p456, %p457
      %p460 = scmp.ne.s32.totalorder %s443, %s459
      %p461 = scmp.eq.s32.totalorder %s47, 0
      %p462 = por %p460, %p461
      %s463 = ssub.s32 %s41, %s48
      %p464 = scmp.eq.s32.totalorder %s463, 0
      %s466 = sadd.s32 %s465, 1
      %s467 = scalar_select %p464, %s465, %s466
      %p470 = pneg %p464
      %p471 = scmp.eq.s32.totalorder %s41, 1
      %p472 = por %p470, %p471
      %p473 = scmp.ne.s32.totalorder %s465, %s468
      %p474 = scmp.eq.s32.totalorder %s41, 0
      %p475 = por %p473, %p474
      %p476 = scmp.ne.s32.totalorder %s465, %s468
      %p477 = scmp.eq.s32.totalorder %s46, 1
      %p478 = por %p476, %p477
      %p479 = scmp.ne.s32.totalorder %s468, %s469
      %p480 = scmp.eq.s32.totalorder %s46, 0
      %p481 = por %p479, %p480
      %p482 = scmp.ne.s32.totalorder %s468, %s469
      %p483 = scmp.eq.s32.totalorder %s47, 1
      %p484 = por %p482, %p483
      %p486 = scmp.ne.s32.totalorder %s469, %s485
      %p487 = scmp.eq.s32.totalorder %s47, 0
      %p488 = por %p486, %p487
      %s490 = sadd.s32 %s489, 1
      %p493 = scmp.eq.s32.totalorder %s41, 1
      %p494 = scmp.ne.s32.totalorder %s489, %s491
      %p495 = scmp.eq.s32.totalorder %s41, 0
      %p496 = por %p494, %p495
      %p497 = scmp.ne.s32.totalorder %s489, %s491
      %p498 = scmp.eq.s32.totalorder %s46, 1
      %p499 = por %p497, %p498
      %p500 = scmp.ne.s32.totalorder %s491, %s492
      %p501 = scmp.eq.s32.totalorder %s46, 0
      %p502 = por %p500, %p501
      %p503 = scmp.ne.s32.totalorder %s491, %s492
      %p504 = scmp.eq.s32.totalorder %s47, 1
      %p505 = por %p503, %p504
      %p507 = scmp.ne.s32.totalorder %s492, %s506
      %p508 = scmp.eq.s32.totalorder %s47, 0
      %p509 = por %p507, %p508
      %s511 = sadd.s32 %s510, 1
      %p514 = scmp.eq.s32.totalorder %s41, 1
      %p515 = scmp.ne.s32.totalorder %s510, %s512
      %p516 = scmp.eq.s32.totalorder %s41, 0
      %p517 = por %p515, %p516
      %p518 = scmp.ne.s32.totalorder %s510, %s512
      %p519 = scmp.eq.s32.totalorder %s46, 1
      %p520 = por %p518, %p519
      %p521 = scmp.ne.s32.totalorder %s512, %s513
      %p522 = scmp.eq.s32.totalorder %s46, 0
      %p523 = por %p521, %p522
      %p524 = scmp.ne.s32.totalorder %s512, %s513
      %p525 = scmp.eq.s32.totalorder %s47, 1
      %p526 = por %p524, %p525
      %p528 = scmp.ne.s32.totalorder %s513, %s527
      %p529 = scmp.eq.s32.totalorder %s47, 0
      %p530 = por %p528, %p529
      %s532 = sadd.s32 %s531, 1
      %p535 = scmp.eq.s32.totalorder %s41, 1
      %p536 = scmp.ne.s32.totalorder %s531, %s533
      %p537 = scmp.eq.s32.totalorder %s41, 0
      %p538 = por %p536, %p537
      %p539 = scmp.ne.s32.totalorder %s531, %s533
      %p540 = scmp.eq.s32.totalorder %s46, 1
      %p541 = por %p539, %p540
      %p542 = scmp.ne.s32.totalorder %s533, %s534
      %p543 = scmp.eq.s32.totalorder %s46, 0
      %p544 = por %p542, %p543
      %p545 = scmp.ne.s32.totalorder %s533, %s534
      %p546 = scmp.eq.s32.totalorder %s47, 1
      %p547 = por %p545, %p546
      %p549 = scmp.ne.s32.totalorder %s534, %s548
      %p550 = scmp.eq.s32.totalorder %s47, 0
      %p551 = por %p549, %p550
      %s553 = sadd.s32 %s552, 1
      %p556 = scmp.eq.s32.totalorder %s41, 1
      %p557 = scmp.ne.s32.totalorder %s552, %s554
      %p558 = scmp.eq.s32.totalorder %s41, 0
      %p559 = por %p557, %p558
      %p560 = scmp.ne.s32.totalorder %s552, %s554
      %p561 = scmp.eq.s32.totalorder %s46, 1
      %p562 = por %p560, %p561
      %p563 = scmp.ne.s32.totalorder %s554, %s555
      %p564 = scmp.eq.s32.totalorder %s46, 0
      %p565 = por %p563, %p564
      %p566 = scmp.ne.s32.totalorder %s554, %s555
      %p567 = scmp.eq.s32.totalorder %s47, 1
      %p568 = por %p566, %p567
      %p570 = scmp.ne.s32.totalorder %s555, %s569
      %p571 = scmp.eq.s32.totalorder %s47, 0
      %p572 = por %p570, %p571
      %s574 = sadd.s32 %s573, 1
      %p577 = scmp.eq.s32.totalorder %s41, 1
      %p578 = scmp.ne.s32.totalorder %s573, %s575
      %p579 = scmp.eq.s32.totalorder %s41, 0
      %p580 = por %p578, %p579
      %p581 = scmp.ne.s32.totalorder %s573, %s575
      %p582 = scmp.eq.s32.totalorder %s46, 1
      %p583 = por %p581, %p582
      %p584 = scmp.ne.s32.totalorder %s575, %s576
      %p585 = scmp.eq.s32.totalorder %s46, 0
      %p586 = por %p584, %p585
      %p587 = scmp.ne.s32.totalorder %s575, %s576
      %p588 = scmp.eq.s32.totalorder %s47, 1
      %p589 = por %p587, %p588
      %p591 = scmp.ne.s32.totalorder %s576, %s590
      %p592 = scmp.eq.s32.totalorder %s47, 0
      %p593 = por %p591, %p592
      %s595 = sadd.s32 %s594, 1
      %p598 = scmp.eq.s32.totalorder %s41, 1
      %p599 = scmp.ne.s32.totalorder %s594, %s596
      %p600 = scmp.eq.s32.totalorder %s41, 0
      %p601 = por %p599, %p600
      %p602 = scmp.ne.s32.totalorder %s594, %s596
      %p603 = scmp.eq.s32.totalorder %s46, 1
      %p604 = por %p602, %p603
      %p605 = scmp.ne.s32.totalorder %s596, %s597
      %p606 = scmp.eq.s32.totalorder %s46, 0
      %p607 = por %p605, %p606
      %p608 = scmp.ne.s32.totalorder %s596, %s597
      %p609 = scmp.eq.s32.totalorder %s47, 1
      %p610 = por %p608, %p609
      %p612 = scmp.ne.s32.totalorder %s597, %s611
      %p613 = scmp.eq.s32.totalorder %s47, 0
      %p614 = por %p612, %p613
      %s616 = sadd.s32 %s615, 1
      %p619 = scmp.eq.s32.totalorder %s41, 1
      %p620 = scmp.ne.s32.totalorder %s615, %s617
      %p621 = scmp.eq.s32.totalorder %s41, 0
      %p622 = por %p620, %p621
      %p623 = scmp.ne.s32.totalorder %s615, %s617
      %p624 = scmp.eq.s32.totalorder %s46, 1
      %p625 = por %p623, %p624
      %p626 = scmp.ne.s32.totalorder %s617, %s618
      %p627 = scmp.eq.s32.totalorder %s46, 0
      %p628 = por %p626, %p627
      %p629 = scmp.ne.s32.totalorder %s617, %s618
      %p630 = scmp.eq.s32.totalorder %s47, 1
      %p631 = por %p629, %p630
      %p633 = scmp.ne.s32.totalorder %s618, %s632
      %p634 = scmp.eq.s32.totalorder %s47, 0
      %p635 = por %p633, %p634
      %p636 = scmp.le.s32.totalorder 1, %s41
      %p637 = scmp.lt.s32.totalorder %s41, 3
      %p638 = pnand %p636, %p637
      %p639 = pneg %p638
      // Predicated region
      $region9: #{tpu_custom_call.1} parent=5 // pred_check
        _
      $region10: #{tpu_custom_call.1} parent=5 // pred_check_branch
        %641 = sbr.rel (%p638) target = $region12
      $region11: #{tpu_custom_call.1} parent=5 // pred_region
        %s642 = ssub.s32 %s41, 1
        // Predicated region
        $region13: #{tpu_custom_call.1} parent=11 // pred_check
          %p643 = pneg %p62
        $region14: #{tpu_custom_call.1} parent=11 // pred_check_branch
          %645 = sbr.rel (%p643) target = $region16
        $region15: #{tpu_custom_call.1} parent=11 // pred_region
          _
        $region16: #{tpu_custom_call.1} parent=11 // pred_fallthru
          _
        // Predicated region
        $region17: #{tpu_custom_call.1} parent=11 // pred_check
          %p646 = pneg %p83
        $region18: #{tpu_custom_call.1} parent=11 // pred_check_branch
          %648 = sbr.rel (%p646) target = $region20
        $region19: #{tpu_custom_call.1} parent=11 // pred_region
          _
        $region20: #{tpu_custom_call.1} parent=11 // pred_fallthru
          _
        // Predicated region
        $region21: #{tpu_custom_call.1} parent=11 // pred_check
          %p649 = pneg %p104
        $region22: #{tpu_custom_call.1} parent=11 // pred_check_branch
          %651 = sbr.rel (%p649) target = $region24
        $region23: #{tpu_custom_call.1} parent=11 // pred_region
          _
        $region24: #{tpu_custom_call.1} parent=11 // pred_fallthru
          _
        // Predicated region
        $region25: #{tpu_custom_call.1} parent=11 // pred_check
          %p652 = pneg %p125
        $region26: #{tpu_custom_call.1} parent=11 // pred_check_branch
          %654 = sbr.rel (%p652) target = $region28
        $region27: #{tpu_custom_call.1} parent=11 // pred_region
          _
        $region28: #{tpu_custom_call.1} parent=11 // pred_fallthru
          _
        // Predicated region
        $region29: #{tpu_custom_call.1} parent=11 // pred_check
          %p655 = pneg %p146
        $region30: #{tpu_custom_call.1} parent=11 // pred_check_branch
          %657 = sbr.rel (%p655) target = $region32
        $region31: #{tpu_custom_call.1} parent=11 // pred_region
          _
        $region32: #{tpu_custom_call.1} parent=11 // pred_fallthru
          _
        // Predicated region
        $region33: #{tpu_custom_call.1} parent=11 // pred_check
          %p658 = pneg %p167
        $region34: #{tpu_custom_call.1} parent=11 // pred_check_branch
          %660 = sbr.rel (%p658) target = $region36
        $region35: #{tpu_custom_call.1} parent=11 // pred_region
          _
        $region36: #{tpu_custom_call.1} parent=11 // pred_fallthru
          _
        // Predicated region
        $region37: #{tpu_custom_call.1} parent=11 // pred_check
          %p661 = pneg %p188
        $region38: #{tpu_custom_call.1} parent=11 // pred_check_branch
          %663 = sbr.rel (%p661) target = $region40
        $region39: #{tpu_custom_call.1} parent=11 // pred_region
          _
        $region40: #{tpu_custom_call.1} parent=11 // pred_fallthru
          _
        // Predicated region
        $region41: #{tpu_custom_call.1} parent=11 // pred_check
          %p664 = pneg %p209
        $region42: #{tpu_custom_call.1} parent=11 // pred_check_branch
          %666 = sbr.rel (%p664) target = $region44
        $region43: #{tpu_custom_call.1} parent=11 // pred_region
          _
        $region44: #{tpu_custom_call.1} parent=11 // pred_fallthru
          _
        // Predicated region
        $region45: #{tpu_custom_call.1} parent=11 // pred_check
          %p667 = pneg %p230
        $region46: #{tpu_custom_call.1} parent=11 // pred_check_branch
          %669 = sbr.rel (%p667) target = $region48
        $region47: #{tpu_custom_call.1} parent=11 // pred_region
          _
        $region48: #{tpu_custom_call.1} parent=11 // pred_fallthru
          _
        // Predicated region
        $region49: #{tpu_custom_call.1} parent=11 // pred_check
          %p670 = pneg %p251
        $region50: #{tpu_custom_call.1} parent=11 // pred_check_branch
          %672 = sbr.rel (%p670) target = $region52
        $region51: #{tpu_custom_call.1} parent=11 // pred_region
          _
        $region52: #{tpu_custom_call.1} parent=11 // pred_fallthru
          _
        // Predicated region
        $region53: #{tpu_custom_call.1} parent=11 // pred_check
          %p673 = pneg %p272
        $region54: #{tpu_custom_call.1} parent=11 // pred_check_branch
          %675 = sbr.rel (%p673) target = $region56
        $region55: #{tpu_custom_call.1} parent=11 // pred_region
          _
        $region56: #{tpu_custom_call.1} parent=11 // pred_fallthru
          _
        // Predicated region
        $region57: #{tpu_custom_call.1} parent=11 // pred_check
          %p676 = pneg %p293
        $region58: #{tpu_custom_call.1} parent=11 // pred_check_branch
          %678 = sbr.rel (%p676) target = $region60
        $region59: #{tpu_custom_call.1} parent=11 // pred_region
          _
        $region60: #{tpu_custom_call.1} parent=11 // pred_fallthru
          _
        // Predicated region
        $region61: #{tpu_custom_call.1} parent=11 // pred_check
          %p679 = pneg %p314
        $region62: #{tpu_custom_call.1} parent=11 // pred_check_branch
          %681 = sbr.rel (%p679) target = $region64
        $region63: #{tpu_custom_call.1} parent=11 // pred_region
          _
        $region64: #{tpu_custom_call.1} parent=11 // pred_fallthru
          _
        // Predicated region
        $region65: #{tpu_custom_call.1} parent=11 // pred_check
          %p682 = pneg %p335
        $region66: #{tpu_custom_call.1} parent=11 // pred_check_branch
          %684 = sbr.rel (%p682) target = $region68
        $region67: #{tpu_custom_call.1} parent=11 // pred_region
          _
        $region68: #{tpu_custom_call.1} parent=11 // pred_fallthru
          _
        // Predicated region
        $region69: #{tpu_custom_call.1} parent=11 // pred_check
          %p685 = pneg %p356
        $region70: #{tpu_custom_call.1} parent=11 // pred_check_branch
          %687 = sbr.rel (%p685) target = $region72
        $region71: #{tpu_custom_call.1} parent=11 // pred_region
          _
        $region72: #{tpu_custom_call.1} parent=11 // pred_fallthru
          _
        // Predicated region
        $region73: #{tpu_custom_call.1} parent=11 // pred_check
          %p688 = pneg %p377
        $region74: #{tpu_custom_call.1} parent=11 // pred_check_branch
          %690 = sbr.rel (%p688) target = $region76
        $region75: #{tpu_custom_call.1} parent=11 // pred_region
          _
        $region76: #{tpu_custom_call.1} parent=11 // pred_fallthru
          _
        // Predicated region
        $region77: #{tpu_custom_call.1} parent=11 // pred_check
          %p691 = pneg %p502
        $region78: #{tpu_custom_call.1} parent=11 // pred_check_branch
          %693 = sbr.rel (%p691) target = $region80
        $region79: #{tpu_custom_call.1} parent=11 // pred_region
          _
        $region80: #{tpu_custom_call.1} parent=11 // pred_fallthru
          _
        // Predicated region
        $region81: #{tpu_custom_call.1} parent=11 // pred_check
          %p694 = pneg %p523
        $region82: #{tpu_custom_call.1} parent=11 // pred_check_branch
          %696 = sbr.rel (%p694) target = $region84
        $region83: #{tpu_custom_call.1} parent=11 // pred_region
          _
        $region84: #{tpu_custom_call.1} parent=11 // pred_fallthru
          _
        // Predicated region
        $region85: #{tpu_custom_call.1} parent=11 // pred_check
          %p697 = pneg %p544
        $region86: #{tpu_custom_call.1} parent=11 // pred_check_branch
          %699 = sbr.rel (%p697) target = $region88
        $region87: #{tpu_custom_call.1} parent=11 // pred_region
          _
        $region88: #{tpu_custom_call.1} parent=11 // pred_fallthru
          _
        // Predicated region
        $region89: #{tpu_custom_call.1} parent=11 // pred_check
          %p700 = pneg %p565
        $region90: #{tpu_custom_call.1} parent=11 // pred_check_branch
          %702 = sbr.rel (%p700) target = $region92
        $region91: #{tpu_custom_call.1} parent=11 // pred_region
          _
        $region92: #{tpu_custom_call.1} parent=11 // pred_fallthru
          _
        // Predicated region
        $region93: #{tpu_custom_call.1} parent=11 // pred_check
          %p703 = pneg %p586
        $region94: #{tpu_custom_call.1} parent=11 // pred_check_branch
          %705 = sbr.rel (%p703) target = $region96
        $region95: #{tpu_custom_call.1} parent=11 // pred_region
          _
        $region96: #{tpu_custom_call.1} parent=11 // pred_fallthru
          _
        // Predicated region
        $region97: #{tpu_custom_call.1} parent=11 // pred_check
          %p706 = pneg %p607
        $region98: #{tpu_custom_call.1} parent=11 // pred_check_branch
          %708 = sbr.rel (%p706) target = $region100
        $region99: #{tpu_custom_call.1} parent=11 // pred_region
          _
        $region100: #{tpu_custom_call.1} parent=11 // pred_fallthru
          _
      $region12: #{tpu_custom_call.1} parent=5 // pred_fallthru
        _
      %p709 = scmp.lt.s32.totalorder %s41, 2
      // Predicated region
      $region101: #{tpu_custom_call.1} parent=5 // pred_check
        %p710 = pneg %p709
      $region102: #{tpu_custom_call.1} parent=5 // pred_check_branch
        %712 = sbr.rel (%p710) target = $region104
      $region103: #{tpu_custom_call.1} parent=5 // pred_region
        // Predicated region
        $region105: #{tpu_custom_call.1} parent=103 // pred_check
          %p713 = pneg %p397
        $region106: #{tpu_custom_call.1} parent=103 // pred_check_branch
          %715 = sbr.rel (%p713) target = $region108
        $region107: #{tpu_custom_call.1} parent=103 // pred_region
          %s716 = sand.u32 %s387, 1
          %s717 = scalar_lea.sflag [#allocation11], %s716
          %s718 = sand.u32 %s387, 1
          %s719 = smul.addr %s718, 64
          %s720 = scalar_lea.vmem [#allocation10], %s719
          %722 = vsyncadd %s717, 0
          %s723 = smul.addr %s41, 16
          %s724 = smul.addr %s723, 4
          %s725 = scalar_lea.hbm %s16, %s724
          %s726 = sshll.u32 %s725, 4
          %s727 = int_to_ptr.hbm [resolvable:$true] %s726
          %s728 = sshll.u32 %s720, 4
          %s729 = int_to_ptr.vmem [resolvable:$true] %s728
          %734 = dma.hbm_to_vmem [thread:$0]  %s727, 1024, %s729, %s717, 64, 64, 4
        $region108: #{tpu_custom_call.1} parent=103 // pred_fallthru
          _
        // Predicated region
        $region109: #{tpu_custom_call.1} parent=103 // pred_check
          %p735 = pneg %p423
        $region110: #{tpu_custom_call.1} parent=103 // pred_check_branch
          %737 = sbr.rel (%p735) target = $region112
        $region111: #{tpu_custom_call.1} parent=103 // pred_region
          %p738 = scmp.lt.s32.totalorder %s41, 1
          %s739 = scalar_select %p738, %s41, 1
          %s740 = scalar_lea.vmem %s17, %s739
        $region112: #{tpu_custom_call.1} parent=103 // pred_fallthru
          _
        // Predicated region
        $region113: #{tpu_custom_call.1} parent=103 // pred_check
          %p741 = pneg %p449
        $region114: #{tpu_custom_call.1} parent=103 // pred_check_branch
          %743 = sbr.rel (%p741) target = $region116
        $region115: #{tpu_custom_call.1} parent=103 // pred_region
          %s744 = sand.u32 %s439, 1
          %s745 = scalar_lea.sflag [#allocation14], %s744
          %s746 = sand.u32 %s439, 1
          %s747 = smul.addr %s746, 64
          %s748 = scalar_lea.vmem [#allocation13], %s747
          %750 = vsyncadd %s745, 0
          %s751 = smul.addr %s41, 16
          %s752 = smul.addr %s751, 4
          %s753 = scalar_lea.hbm %s18, %s752
          %s754 = sshll.u32 %s753, 4
          %s755 = int_to_ptr.hbm [resolvable:$true] %s754
          %s756 = sshll.u32 %s748, 4
          %s757 = int_to_ptr.vmem [resolvable:$true] %s756
          %762 = dma.hbm_to_vmem [thread:$0]  %s755, 1024, %s757, %s745, 64, 64, 4
        $region116: #{tpu_custom_call.1} parent=103 // pred_fallthru
          _
        // Predicated region
        $region117: #{tpu_custom_call.1} parent=103 // pred_check
          %p763 = pneg %p475
        $region118: #{tpu_custom_call.1} parent=103 // pred_check_branch
          %765 = sbr.rel (%p763) target = $region120
        $region119: #{tpu_custom_call.1} parent=103 // pred_region
          %p766 = scmp.lt.s32.totalorder %s41, 1
          %s767 = scalar_select %p766, %s41, 1
          %s768 = scalar_lea.vmem %s19, %s767
        $region120: #{tpu_custom_call.1} parent=103 // pred_fallthru
          _
      $region104: #{tpu_custom_call.1} parent=5 // pred_fallthru
        _
      %p769 = scmp.le.s32.totalorder 1, %s41
      %p770 = scmp.lt.s32.totalorder %s41, 3
      %p771 = pnand %p769, %p770
      %p772 = pneg %p771
      // Predicated region
      $region121: #{tpu_custom_call.1} parent=5 // pred_check
        _
      $region122: #{tpu_custom_call.1} parent=5 // pred_check_branch
        %774 = sbr.rel (%p771) target = $region124
      $region123: #{tpu_custom_call.1} parent=5 // pred_region
        %s775 = ssub.s32 %s41, 1
        %s776 = sand.u32 %s390, 1
        %s777 = scalar_lea.sflag [#allocation11], %s776
        %s778 = sand.u32 %s390, 1
        %s779 = smul.addr %s778, 64
        %s780 = scalar_lea.vmem [#allocation10], %s779
        // Predicated region
        $region125: #{tpu_custom_call.1} parent=123 // pred_check
          %p781 = pneg %p403
        $region126: #{tpu_custom_call.1} parent=123 // pred_check_branch
          %783 = sbr.rel (%p781) target = $region128
        $region127: #{tpu_custom_call.1} parent=123 // pred_region
          %785 = dma.done %s777, 1024
        $region128: #{tpu_custom_call.1} parent=123 // pred_fallthru
          _
        %s786 = sand.u32 %s442, 1
        %s787 = scalar_lea.sflag [#allocation14], %s786
        %s788 = sand.u32 %s442, 1
        %s789 = smul.addr %s788, 64
        %s790 = scalar_lea.vmem [#allocation13], %s789
        // Predicated region
        $region129: #{tpu_custom_call.1} parent=123 // pred_check
          %p791 = pneg %p455
        $region130: #{tpu_custom_call.1} parent=123 // pred_check_branch
          %793 = sbr.rel (%p791) target = $region132
        $region131: #{tpu_custom_call.1} parent=123 // pred_region
          %795 = dma.done %s787, 1024
        $region132: #{tpu_custom_call.1} parent=123 // pred_fallthru
          _
        %p796 = pneg %p62
        %p797 = pneg %p59
        %p798 = pneg %p83
        %p799 = pneg %p80
        %p800 = pneg %p104
        %p801 = pneg %p101
        %p802 = pneg %p125
        %p803 = pneg %p122
        %p804 = pneg %p146
        %p805 = pneg %p143
        %p806 = pneg %p167
        %p807 = pneg %p164
        %p808 = pneg %p188
        %p809 = pneg %p185
        %p810 = pneg %p209
        %p811 = pneg %p206
        %p812 = pneg %p230
        %p813 = pneg %p227
        %p814 = pneg %p251
        %p815 = pneg %p248
        %p816 = pneg %p272
        %p817 = pneg %p269
        %p818 = pneg %p293
        %p819 = pneg %p290
        %p820 = pneg %p314
        %p821 = pneg %p311
        %p822 = pneg %p335
        %p823 = pneg %p332
        %p824 = pneg %p356
        %p825 = pneg %p353
        %p826 = pneg %p377
        %p827 = pneg %p374
        %s828 = sand.u32 %s390, 1
        %s829 = scalar_lea.sflag [#allocation11], %s828
        %s830 = sand.u32 %s390, 1
        %s831 = smul.addr %s830, 64
        %s832 = scalar_lea.vmem [#allocation10], %s831
        %p833 = pneg %p403
        %p834 = pneg %p400
        %p835 = scmp.lt.s32.totalorder %s46, 1
        %s836 = scalar_select %p835, %s46, 1
        %s837 = scalar_lea.vmem %s17, %s836
        %p838 = pneg %p429
        %p839 = pneg %p426
        %s840 = sand.u32 %s442, 1
        %s841 = scalar_lea.sflag [#allocation14], %s840
        %s842 = sand.u32 %s442, 1
        %s843 = smul.addr %s842, 64
        %s844 = scalar_lea.vmem [#allocation13], %s843
        %p845 = pneg %p455
        %p846 = pneg %p452
        %p847 = scmp.lt.s32.totalorder %s46, 1
        %s848 = scalar_select %p847, %s46, 1
        %s849 = scalar_lea.vmem %s19, %s848
        %p850 = pneg %p481
        %p851 = pneg %p478
        %p852 = pneg %p502
        %p853 = pneg %p499
        %p854 = pneg %p523
        %p855 = pneg %p520
        %p856 = pneg %p544
        %p857 = pneg %p541
        %p858 = pneg %p565
        %p859 = pneg %p562
        %p860 = pneg %p586
        %p861 = pneg %p583
        %p862 = pneg %p607
        %p863 = pneg %p604
        %p864 = pneg %p628
        %p865 = pneg %p625
        %p866 = scmp.lt.s32.totalorder %s46, 1
        %s867 = scalar_select %p866, %s46, 1
        %s868 = scalar_lea.vmem %s17, %s867
        %p869 = scmp.lt.s32.totalorder %s46, 1
        %s870 = scalar_select %p869, %s46, 1
        %s871 = scalar_lea.vmem %s19, %s870
        %p873 = scmp.eq.s32.totalorder %s46, 0
        // Predicated region
        $region133: #{tpu_custom_call.1} parent=123 // pred_check
          %p874 = pneg %p873
        $region134: #{tpu_custom_call.1} parent=123 // pred_check_branch
          %876 = sbr.rel (%p874) target = $region136
        $region135: #{tpu_custom_call.1} parent=123 // pred_region
          %v877 = vld [vmem:[%s6] sm:$0xf]
          %v878 = vld [vmem:[%s6 + $0x4] sm:$0xf]
          %v879 = vld [vmem:[%s10] sm:$0xf]
          %v880 = vld [vmem:[%s11] sm:$0x1]
          %v882 = vperm.slane %v880, 0
          %v886 = vunpack.c.l.b16 %v877
          %v887 = vunpack.c.l.b16 %v878
          %v888 = vpack.c.b16 %v887, %v886
          %vm889 = vcmask 64512
          %v891 = vsel %vm889, %v888, 0
          %vm893 = vcmask 1043456
          %v895 = vsel %vm893, %v879, 0
          %897 = vmatpush.bf16.msra.mxu0 0
          %898 = vmatpush.bf16.msra.mxu0 0
          %899 = vmatpush.bf16.msra.mxu0 0
          %900 = vmatpush.bf16.msra.mxu0 0
          %901 = vmatpush.bf16.msra.mxu0 0
          %902 = vmatpush.bf16.msra.mxu0 0
          %903 = vmatpush.bf16.msra.mxu0 0
          %904 = vmatpush.bf16.msra.mxu0 %v895
          %905 = vmatmul.bf16.gmra.mxu0 %v891
          %v906 = vpop.f32.mrf.mxu0
          %v907 = vadd.f32 %v882, %v906
          %v908 = vpop.f32.mrf.mxu0
          %v909 = vadd.f32 %v882, %v908
          %910 = vdwg.mxu0
          %v911 = vmax.f32 %v907, 0.0
          %v912 = vmax.f32 %v909, 0.0
          %v913 = vpack.c.bf16 %v911, %v911
          %v914 = vpack.c.bf16 %v912, %v912
          %915 = vst [vmem:[#allocation2] sm:$0xf] %v913
          %916 = vst [vmem:[#allocation2 + $0x4] sm:$0xf] %v914
          %v917 = vld [vmem:[%s7] sm:$0xf]
          %v918 = vld [vmem:[%s7 + $0x4] sm:$0xf]
          %v919 = vld [vmem:[%s12] sm:$0xf]
          %v920 = vld [vmem:[%s13] sm:$0x1]
          %v922 = vperm.slane %v920, 0
          %v926 = vunpack.c.l.b16 %v917
          %v927 = vunpack.c.l.b16 %v918
          %v928 = vpack.c.b16 %v927, %v926
          %v930 = vsel %vm889, %v928, 0
          %v933 = vsel %vm893, %v919, 0
          %935 = vmatpush.bf16.msra.mxu0 0
          %936 = vmatpush.bf16.msra.mxu0 0
          %937 = vmatpush.bf16.msra.mxu0 0
          %938 = vmatpush.bf16.msra.mxu0 0
          %939 = vmatpush.bf16.msra.mxu0 0
          %940 = vmatpush.bf16.msra.mxu0 0
          %941 = vmatpush.bf16.msra.mxu0 0
          %942 = vmatpush.bf16.msra.mxu0 %v933
          %943 = vmatmul.bf16.gmra.mxu0 %v930
          %v944 = vpop.f32.mrf.mxu0
          %v945 = vadd.f32 %v922, %v944
          %v946 = vpop.f32.mrf.mxu0
          %v947 = vadd.f32 %v922, %v946
          %948 = vdwg.mxu0
          %v949 = vmax.f32 %v945, 0.0
          %v950 = vmax.f32 %v947, 0.0
          %v951 = vpack.c.bf16 %v949, %v949
          %v952 = vpack.c.bf16 %v950, %v950
          %953 = vst [vmem:[#allocation3] sm:$0xf] %v951
          %954 = vst [vmem:[#allocation3 + $0x4] sm:$0xf] %v952
          %v955 = vld [vmem:[%s8] sm:$0xf]
          %v956 = vld [vmem:[%s8 + $0x4] sm:$0xf]
          %v957 = vld [vmem:[%s8 + $0x8] sm:$0xf]
          %v958 = vld [vmem:[%s14] sm:$0xf]
          %v959 = vld [vmem:[%s15] sm:$0x1]
          %v961 = vperm.slane %v959, 0
          %v966 = vunpack.c.l.b16 %v955
          %v967 = vunpack.c.l.b16 %v956
          %v968 = vunpack.c.l.b16 %v957
          %v969 = vpack.c.b16 %v967, %v966
          %v970 = vpack.c.b16 %v968, %v968
          %v972 = vsel %vm889, %v969, 0
          %v975 = vsel %vm889, %v970, 0
          %v978 = vsel %vm893, %v958, 0
          %980 = vmatpush.bf16.msra.mxu0 0
          %981 = vmatpush.bf16.msra.mxu0 0
          %982 = vmatpush.bf16.msra.mxu0 0
          %983 = vmatpush.bf16.msra.mxu0 0
          %984 = vmatpush.bf16.msra.mxu0 0
          %985 = vmatpush.bf16.msra.mxu0 0
          %986 = vmatpush.bf16.msra.mxu0 0
          %987 = vmatpush.bf16.msra.mxu0 %v978
          %988 = vmatmul.bf16.gmra.mxu0 %v972
          %v989 = vpop.f32.mrf.mxu0
          %v990 = vadd.f32 %v961, %v989
          %v991 = vpop.f32.mrf.mxu0
          %v992 = vadd.f32 %v961, %v991
          %993 = vmatmul.bf16.gmra.mxu0 %v975
          %v994 = vpop.f32.mrf.mxu0
          %v995 = vadd.f32 %v961, %v994
          %v996 = vpop.f32.mrf.mxu0
          %997 = vdwg.mxu0
          %v998 = vmax.f32 %v990, 0.0
          %v999 = vmax.f32 %v992, 0.0
          %v1000 = vmax.f32 %v995, 0.0
          %v1001 = vpack.c.bf16 %v998, %v998
          %v1002 = vpack.c.bf16 %v999, %v999
          %v1003 = vpack.c.bf16 %v1000, %v1000
          %1004 = vst [vmem:[#allocation4] sm:$0xf] %v1001
          %1005 = vst [vmem:[#allocation4 + $0x4] sm:$0xf] %v1002
          %1006 = vst [vmem:[#allocation4 + $0x8] sm:$0xf] %v1003
          %1007 = vst [vmem:[#allocation15] sm:$0xff] 0.0
        $region136: #{tpu_custom_call.1} parent=123 // pred_fallthru
          _
        %1008 = vst [vmem:[#allocation5] sm:$0xff] 0.0
        %1009 = vst [vmem:[#allocation5 + $0x8] sm:$0xff] 0.0
        %1010 = vst [vmem:[#allocation6] sm:$0xff] 0.0
        %1011 = vst [vmem:[#allocation6 + $0x8] sm:$0xff] 0.0
        %v1012 = vld [vmem:[%s0] sm:$0x1]
        %v1013 = vld [vmem:[%s2] sm:$0x1]
        %v1014 = vld [vmem:[%s1] sm:$0xff]
        %v1015 = vld [vmem:[%s1 + $0x8] sm:$0xff]
        %v1016 = vld [vmem:[%s1 + $0x10] sm:$0xff]
        %v1017 = vld [vmem:[%s3] sm:$0xff]
        %v1018 = vld [vmem:[%s3 + $0x8] sm:$0xff]
        %v1019 = vld [vmem:[%s3 + $0x10] sm:$0xff]
        %v1020 = vld [vmem:[#allocation4] sm:$0xf]
        %v1021 = vld [vmem:[#allocation4 + $0x4] sm:$0xf]
        %v1022 = vld [vmem:[#allocation4 + $0x8] sm:$0xf]
        %v1023 = vunpack.c.l.bf16 %v1020
        %v1024 = vunpack.c.l.bf16 %v1021
        %v1025 = vunpack.c.l.bf16 %v1022
        %v1026 = vlaneseq
        %v1027 = vand.u32 %v1026, 127
        %1028 = vset.pattern.permute.xlu0 0
        %1029 = vperm.xlu0 %1028, %v1014
        %v1030 = vpop.permute.xlu0 %1029
        %1031 = vset.pattern.permute.xlu0 0
        %1032 = vperm.xlu0 %1031, %v1015
        %v1033 = vpop.permute.xlu0 %1032
        %1034 = vset.pattern.permute.xlu0 0
        %1035 = vperm.xlu0 %1034, %v1016
        %v1036 = vpop.permute.xlu0 %1035
        %vm1037 = vcmp.eq.s32.totalorder %v1027, %v1030
        %vm1038 = vcmp.eq.s32.totalorder %v1027, %v1033
        %vm1039 = vcmp.eq.s32.totalorder %v1027, %v1036
        %v1040 = vsel %vm1037, 1, 0
        %v1041 = vsel %vm1038, 1, 0
        %v1042 = vsel %vm1039, 1, 0
        %v1043 = vcvt.s32.f32 %v1040
        %v1044 = vcvt.s32.f32 %v1041
        %v1045 = vcvt.s32.f32 %v1042
        %v1046 = vpack.c.bf16 %v1044, %v1043
        %v1047 = vpack.c.bf16 %v1045, %v1045
        %1048 = vset.pattern.permute.xlu0 0
        %1049 = vperm.xlu0 %1048, %v1017
        %v1050 = vpop.permute.xlu0 %1049
        %1051 = vset.pattern.permute.xlu0 0
        %1052 = vperm.xlu0 %1051, %v1018
        %v1053 = vpop.permute.xlu0 %1052
        %1054 = vset.pattern.permute.xlu0 0
        %1055 = vperm.xlu0 %1054, %v1019
        %v1056 = vpop.permute.xlu0 %1055
        %vm1057 = vcmp.eq.s32.totalorder %v1027, %v1050
        %vm1058 = vcmp.eq.s32.totalorder %v1027, %v1053
        %vm1059 = vcmp.eq.s32.totalorder %v1027, %v1056
        %v1060 = vsel %vm1057, 1, 0
        %v1061 = vsel %vm1058, 1, 0
        %v1062 = vsel %vm1059, 1, 0
        %v1063 = vcvt.s32.f32 %v1060
        %v1064 = vcvt.s32.f32 %v1061
        %v1065 = vcvt.s32.f32 %v1062
        %v1066 = vpack.c.bf16 %v1064, %v1063
        %v1067 = vpack.c.bf16 %v1065, %v1065
        %v1068 = vlaneseq
        %v1069 = vshrl.u32 %v1068, 7
        %v1070 = vadd.s32 %v1069, 8
        %v1071 = vperm.slane %v1012, 0
        %vm1072 = vcmp.eq.s32.totalorder %v1069, %v1071
        %vm1073 = vcmp.eq.s32.totalorder %v1070, %v1071
        %v1074 = vsel %vm1072, 1, 0
        %v1075 = vsel %vm1073, 1, 0
        %v1076 = vcvt.s32.f32 %v1074
        %v1077 = vcvt.s32.f32 %v1075
        %v1078 = vpack.c.bf16 %v1077, %v1076
        %v1079 = vperm.slane %v1013, 0
        %vm1080 = vcmp.eq.s32.totalorder %v1069, %v1079
        %vm1081 = vcmp.eq.s32.totalorder %v1070, %v1079
        %v1082 = vsel %vm1080, 1, 0
        %v1083 = vsel %vm1081, 1, 0
        %v1084 = vcvt.s32.f32 %v1082
        %v1085 = vcvt.s32.f32 %v1083
        %v1086 = vpack.c.bf16 %v1085, %v1084
        %v1087 = vld [vmem:[#allocation3] sm:$0xf]
        %v1088 = vld [vmem:[#allocation3 + $0x4] sm:$0xf]
        %v1091 = vunpack.c.l.b16 %v1087
        %v1092 = vunpack.c.l.b16 %v1088
        %v1093 = vpack.c.b16 %v1092, %v1091
        %vm1095 = vcmask 130048
        %v1097 = vsel %vm1095, %v1066, 0
        %v1100 = vsel %vm1095, %v1067, 0
        %1102 = vmatpush.bf16.msra.mxu0 0
        %1103 = vmatpush.bf16.msra.mxu0 0
        %1104 = vmatpush.bf16.msra.mxu0 0
        %1105 = vmatpush.bf16.msra.mxu0 0
        %1106 = vmatpush.bf16.msra.mxu0 0
        %1107 = vmatpush.bf16.msra.mxu0 0
        %1108 = vmatpush.bf16.msra.mxu0 0
        %1109 = vmatpush.bf16.msra.mxu0 %v1093
        %1110 = vmatmul.bf16.gmra.mxu0 %v1097
        %v1111 = vpop.f32.mrf.mxu0
        %v1112 = vadd.f32 0.0, %v1111
        %v1113 = vpop.f32.mrf.mxu0
        %v1114 = vadd.f32 0.0, %v1113
        %1115 = vmatmul.bf16.gmra.mxu0 %v1100
        %v1116 = vpop.f32.mrf.mxu0
        %v1117 = vadd.f32 0.0, %v1116
        %v1118 = vpop.f32.mrf.mxu0
        %1119 = vdwg.mxu0
        %v1120 = vld [vmem:[#allocation2] sm:$0xf]
        %v1121 = vld [vmem:[#allocation2 + $0x4] sm:$0xf]
        %v1124 = vunpack.c.l.b16 %v1120
        %v1125 = vunpack.c.l.b16 %v1121
        %v1126 = vpack.c.b16 %v1125, %v1124
        %v1129 = vsel %vm1095, %v1046, 0
        %v1132 = vsel %vm1095, %v1047, 0
        %1134 = vmatpush.bf16.msra.mxu0 0
        %1135 = vmatpush.bf16.msra.mxu0 0
        %1136 = vmatpush.bf16.msra.mxu0 0
        %1137 = vmatpush.bf16.msra.mxu0 0
        %1138 = vmatpush.bf16.msra.mxu0 0
        %1139 = vmatpush.bf16.msra.mxu0 0
        %1140 = vmatpush.bf16.msra.mxu0 0
        %1141 = vmatpush.bf16.msra.mxu0 %v1126
        %1142 = vmatmul.bf16.gmra.mxu0 %v1129
        %v1143 = vpop.f32.mrf.mxu0
        %v1144 = vadd.f32 0.0, %v1143
        %v1145 = vpop.f32.mrf.mxu0
        %v1146 = vadd.f32 0.0, %v1145
        %1147 = vmatmul.bf16.gmra.mxu0 %v1132
        %v1148 = vpop.f32.mrf.mxu0
        %v1149 = vadd.f32 0.0, %v1148
        %v1150 = vpop.f32.mrf.mxu0
        %1151 = vdwg.mxu0
        %v1152 = vmul.f32 %v1112, %v1023
        %v1153 = vmul.f32 %v1114, %v1024
        %v1154 = vmul.f32 %v1117, %v1025
        %v1155 = vpack.c.bf16 %v1153, %v1152
        %v1156 = vpack.c.bf16 %v1154, %v1154
        %v1157 = vmul.f32 %v1144, %v1023
        %v1158 = vmul.f32 %v1146, %v1024
        %v1159 = vmul.f32 %v1149, %v1025
        %v1160 = vpack.c.bf16 %v1158, %v1157
        %v1161 = vpack.c.bf16 %v1159, %v1159
        %v1162 = vld [vmem:[#allocation5] sm:$0xff]
        %v1163 = vld [vmem:[#allocation5 + $0x8] sm:$0xff]
        %vm1164 = vcmask 195584
        %v1166 = vsel %vm1164, %v1078, 0
        %vm1168 = vcmask 1043456
        %v1170 = vsel %vm1168, %v1156, 0
        %1172 = vmatpush.bf16.msra.mxu0 0
        %1173 = vmatpush.bf16.msra.mxu0 0
        %1174 = vmatpush.bf16.msra.mxu0 0
        %1175 = vmatpush.bf16.msra.mxu0 0
        %1176 = vmatpush.bf16.msra.mxu0 0
        %1177 = vmatpush.bf16.msra.mxu0 0
        %1178 = vmatpush.bf16.msra.mxu0 %v1170
        %1179 = vmatpush.bf16.msra.mxu0 %v1155
        %1180 = vmatmul.bf16.gmra.mxu0 %v1166
        %v1181 = vpop.f32.mrf.mxu0
        %v1182 = vadd.f32 0.0, %v1181
        %v1183 = vpop.f32.mrf.mxu0
        %v1184 = vadd.f32 0.0, %v1183
        %1185 = vdwg.mxu0
        %v1186 = vadd.f32 %v1162, %v1182
        %v1187 = vadd.f32 %v1163, %v1184
        %1188 = vst [vmem:[#allocation5] sm:$0xff] %v1186
        %1189 = vst [vmem:[#allocation5 + $0x8] sm:$0xff] %v1187
        %v1190 = vld [vmem:[#allocation6] sm:$0xff]
        %v1191 = vld [vmem:[#allocation6 + $0x8] sm:$0xff]
        %v1193 = vsel %vm1164, %v1086, 0
        %v1196 = vsel %vm1168, %v1161, 0
        %1198 = vmatpush.bf16.msra.mxu0 0
        %1199 = vmatpush.bf16.msra.mxu0 0
        %1200 = vmatpush.bf16.msra.mxu0 0
        %1201 = vmatpush.bf16.msra.mxu0 0
        %1202 = vmatpush.bf16.msra.mxu0 0
        %1203 = vmatpush.bf16.msra.mxu0 0
        %1204 = vmatpush.bf16.msra.mxu0 %v1196
        %1205 = vmatpush.bf16.msra.mxu0 %v1160
        %1206 = vmatmul.bf16.gmra.mxu0 %v1193
        %v1207 = vpop.f32.mrf.mxu0
        %v1208 = vadd.f32 0.0, %v1207
        %v1209 = vpop.f32.mrf.mxu0
        %v1210 = vadd.f32 0.0, %v1209
        %1211 = vdwg.mxu0
        %v1212 = vadd.f32 %v1190, %v1208
        %v1213 = vadd.f32 %v1191, %v1210
        %1214 = vst [vmem:[#allocation6] sm:$0xff] %v1212
        %1215 = vst [vmem:[#allocation6 + $0x8] sm:$0xff] %v1213
        %v1216 = vld [vmem:[%s780] sm:$0xf]
        %v1217 = vld [vmem:[%s780 + $0x4] sm:$0xf]
        %v1218 = vld [vmem:[%s780 + $0x8] sm:$0xf]
        %v1219 = vld [vmem:[%s780 + $0xc] sm:$0xf]
        %v1220 = vld [vmem:[%s780 + $0x10] sm:$0xf]
        %v1221 = vld [vmem:[%s780 + $0x14] sm:$0xf]
        %v1222 = vld [vmem:[%s780 + $0x18] sm:$0xf]
        %v1223 = vld [vmem:[%s780 + $0x1c] sm:$0xf]
        %v1224 = vld [vmem:[%s780 + $0x20] sm:$0xf]
        %v1225 = vld [vmem:[%s780 + $0x24] sm:$0xf]
        %v1226 = vld [vmem:[%s780 + $0x28] sm:$0xf]
        %v1227 = vld [vmem:[%s780 + $0x2c] sm:$0xf]
        %v1228 = vld [vmem:[%s780 + $0x30] sm:$0xf]
        %v1229 = vld [vmem:[%s780 + $0x34] sm:$0xf]
        %v1230 = vld [vmem:[%s780 + $0x38] sm:$0xf]
        %v1231 = vld [vmem:[%s780 + $0x3c] sm:$0xf]
        %v1232 = vld [vmem:[%s790] sm:$0xf]
        %v1233 = vld [vmem:[%s790 + $0x4] sm:$0xf]
        %v1234 = vld [vmem:[%s790 + $0x8] sm:$0xf]
        %v1235 = vld [vmem:[%s790 + $0xc] sm:$0xf]
        %v1236 = vld [vmem:[%s790 + $0x10] sm:$0xf]
        %v1237 = vld [vmem:[%s790 + $0x14] sm:$0xf]
        %v1238 = vld [vmem:[%s790 + $0x18] sm:$0xf]
        %v1239 = vld [vmem:[%s790 + $0x1c] sm:$0xf]
        %v1240 = vld [vmem:[%s790 + $0x20] sm:$0xf]
        %v1241 = vld [vmem:[%s790 + $0x24] sm:$0xf]
        %v1242 = vld [vmem:[%s790 + $0x28] sm:$0xf]
        %v1243 = vld [vmem:[%s790 + $0x2c] sm:$0xf]
        %v1244 = vld [vmem:[%s790 + $0x30] sm:$0xf]
        %v1245 = vld [vmem:[%s790 + $0x34] sm:$0xf]
        %v1246 = vld [vmem:[%s790 + $0x38] sm:$0xf]
        %v1247 = vld [vmem:[%s790 + $0x3c] sm:$0xf]
        %v1248 = vld [vmem:[#allocation2] sm:$0xf]
        %v1249 = vld [vmem:[#allocation2 + $0x4] sm:$0xf]
        %v1250 = vunpack.c.l.bf16 %v1248
        %v1251 = vunpack.c.l.bf16 %v1249
        %v1252 = vld [vmem:[#allocation5] sm:$0xff]
        %v1253 = vld [vmem:[#allocation5 + $0x8] sm:$0xff]
        %v1254 = vadd.f32 %v1250, %v1252
        %v1255 = vadd.f32 %v1251, %v1253
        %v1256 = vpack.c.bf16 %v1255, %v1254
        %v1257 = vld [vmem:[#allocation3] sm:$0xf]
        %v1258 = vld [vmem:[#allocation3 + $0x4] sm:$0xf]
        %v1259 = vunpack.c.l.bf16 %v1257
        %v1260 = vunpack.c.l.bf16 %v1258
        %v1261 = vld [vmem:[#allocation6] sm:$0xff]
        %v1262 = vld [vmem:[#allocation6 + $0x8] sm:$0xff]
        %v1263 = vadd.f32 %v1259, %v1261
        %v1264 = vadd.f32 %v1260, %v1262
        %v1265 = vpack.c.bf16 %v1264, %v1263
        %v1266 = vld [vmem:[%s868] sm:$0x1]
        %v1268 = vperm.slane %v1266, 0
        %v1286 = vunpack.c.l.b16 %v1216
        %v1287 = vunpack.c.l.b16 %v1217
        %v1288 = vunpack.c.l.b16 %v1218
        %v1289 = vunpack.c.l.b16 %v1219
        %v1290 = vunpack.c.l.b16 %v1220
        %v1291 = vunpack.c.l.b16 %v1221
        %v1292 = vunpack.c.l.b16 %v1222
        %v1293 = vunpack.c.l.b16 %v1223
        %v1294 = vunpack.c.l.b16 %v1224
        %v1295 = vunpack.c.l.b16 %v1225
        %v1296 = vunpack.c.l.b16 %v1226
        %v1297 = vunpack.c.l.b16 %v1227
        %v1298 = vunpack.c.l.b16 %v1228
        %v1299 = vunpack.c.l.b16 %v1229
        %v1300 = vunpack.c.l.b16 %v1230
        %v1301 = vunpack.c.l.b16 %v1231
        %v1302 = vpack.c.b16 %v1287, %v1286
        %v1303 = vpack.c.b16 %v1289, %v1288
        %v1304 = vpack.c.b16 %v1291, %v1290
        %v1305 = vpack.c.b16 %v1293, %v1292
        %v1306 = vpack.c.b16 %v1295, %v1294
        %v1307 = vpack.c.b16 %v1297, %v1296
        %v1308 = vpack.c.b16 %v1299, %v1298
        %v1309 = vpack.c.b16 %v1301, %v1300
        %1318 = vmatpush.bf16.msra.mxu0 %v1309
        %1319 = vmatpush.bf16.msra.mxu0 %v1308
        %1320 = vmatpush.bf16.msra.mxu0 %v1307
        %1321 = vmatpush.bf16.msra.mxu0 %v1306
        %1322 = vmatpush.bf16.msra.mxu0 %v1305
        %1323 = vmatpush.bf16.msra.mxu0 %v1304
        %1324 = vmatpush.bf16.msra.mxu0 %v1303
        %1325 = vmatpush.bf16.msra.mxu0 %v1302
        %1326 = vmatmul.bf16.gmra.mxu0 %v1256
        %v1327 = vpop.f32.mrf.mxu0
        %v1328 = vadd.f32 %v1268, %v1327
        %v1329 = vpop.f32.mrf.mxu0
        %v1330 = vadd.f32 %v1268, %v1329
        %1331 = vdwg.mxu0
        %v1332 = vmax.f32 %v1328, 0.0
        %v1333 = vmax.f32 %v1330, 0.0
        %v1334 = vpack.c.bf16 %v1332, %v1332
        %v1335 = vpack.c.bf16 %v1333, %v1333
        %v1336 = vld [vmem:[%s871] sm:$0x1]
        %v1338 = vperm.slane %v1336, 0
        %v1356 = vunpack.c.l.b16 %v1232
        %v1357 = vunpack.c.l.b16 %v1233
        %v1358 = vunpack.c.l.b16 %v1234
        %v1359 = vunpack.c.l.b16 %v1235
        %v1360 = vunpack.c.l.b16 %v1236
        %v1361 = vunpack.c.l.b16 %v1237
        %v1362 = vunpack.c.l.b16 %v1238
        %v1363 = vunpack.c.l.b16 %v1239
        %v1364 = vunpack.c.l.b16 %v1240
        %v1365 = vunpack.c.l.b16 %v1241
        %v1366 = vunpack.c.l.b16 %v1242
        %v1367 = vunpack.c.l.b16 %v1243
        %v1368 = vunpack.c.l.b16 %v1244
        %v1369 = vunpack.c.l.b16 %v1245
        %v1370 = vunpack.c.l.b16 %v1246
        %v1371 = vunpack.c.l.b16 %v1247
        %v1372 = vpack.c.b16 %v1357, %v1356
        %v1373 = vpack.c.b16 %v1359, %v1358
        %v1374 = vpack.c.b16 %v1361, %v1360
        %v1375 = vpack.c.b16 %v1363, %v1362
        %v1376 = vpack.c.b16 %v1365, %v1364
        %v1377 = vpack.c.b16 %v1367, %v1366
        %v1378 = vpack.c.b16 %v1369, %v1368
        %v1379 = vpack.c.b16 %v1371, %v1370
        %1388 = vmatpush.bf16.msra.mxu0 %v1379
        %1389 = vmatpush.bf16.msra.mxu0 %v1378
        %1390 = vmatpush.bf16.msra.mxu0 %v1377
        %1391 = vmatpush.bf16.msra.mxu0 %v1376
        %1392 = vmatpush.bf16.msra.mxu0 %v1375
        %1393 = vmatpush.bf16.msra.mxu0 %v1374
        %1394 = vmatpush.bf16.msra.mxu0 %v1373
        %1395 = vmatpush.bf16.msra.mxu0 %v1372
        %1396 = vmatmul.bf16.gmra.mxu0 %v1265
        %v1397 = vpop.f32.mrf.mxu0
        %v1398 = vadd.f32 %v1338, %v1397
        %v1399 = vpop.f32.mrf.mxu0
        %v1400 = vadd.f32 %v1338, %v1399
        %1401 = vdwg.mxu0
        %v1402 = vmax.f32 %v1398, 0.0
        %v1403 = vmax.f32 %v1400, 0.0
        %v1404 = vpack.c.bf16 %v1402, %v1402
        %v1405 = vpack.c.bf16 %v1403, %v1403
        %1406 = vst [vmem:[#allocation2] sm:$0xf] %v1334
        %1407 = vst [vmem:[#allocation2 + $0x4] sm:$0xf] %v1335
        %1408 = vst [vmem:[#allocation3] sm:$0xf] %v1404
        %1409 = vst [vmem:[#allocation3 + $0x4] sm:$0xf] %v1405
        %v1410 = vld [vmem:[%s4] sm:$0x1]
        %v1411 = vperm.slane %v1410, 0
        %vm1412 = vcmp.eq.s32.totalorder %v1069, %v1411
        %v1413 = vsel %vm1412, 1, 0
        %v1414 = vcvt.s32.f32 %v1413
        %v1415 = vpack.c.bf16 %v1414, %v1414
        %v1416 = vld [vmem:[%s5] sm:$0x1]
        %v1417 = vperm.slane %v1416, 0
        %vm1418 = vcmp.eq.s32.totalorder %v1069, %v1417
        %v1419 = vsel %vm1418, 1, 0
        %v1420 = vcvt.s32.f32 %v1419
        %v1421 = vpack.c.bf16 %v1420, %v1420
        %v1424 = vunpack.c.l.b16 %v1334
        %v1425 = vunpack.c.l.b16 %v1335
        %v1426 = vpack.c.b16 %v1425, %v1424
        %v1429 = vsel %vm1095, %v1415, 0
        %1431 = vmatpush.bf16.msra.mxu0 0
        %1432 = vmatpush.bf16.msra.mxu0 0
        %1433 = vmatpush.bf16.msra.mxu0 0
        %1434 = vmatpush.bf16.msra.mxu0 0
        %1435 = vmatpush.bf16.msra.mxu0 0
        %1436 = vmatpush.bf16.msra.mxu0 0
        %1437 = vmatpush.bf16.msra.mxu0 0
        %1438 = vmatpush.bf16.msra.mxu0 %v1426
        %1439 = vmatmul.bf16.gmra.mxu0 %v1429
        %v1440 = vpop.f32.mrf.mxu0
        %v1441 = vadd.f32 0.0, %v1440
        %v1442 = vpop.f32.mrf.mxu0
        %1443 = vdwg.mxu0
        %s1444 = smul.u32 %s46, 8
        %s1445 = scalar_lea.vmem [#allocation7], %s1444
        %1446 = vst [vmem:[%s1445] sm:$0xff] %v1441
        %v1449 = vunpack.c.l.b16 %v1404
        %v1450 = vunpack.c.l.b16 %v1405
        %v1451 = vpack.c.b16 %v1450, %v1449
        %v1454 = vsel %vm1095, %v1421, 0
        %1456 = vmatpush.bf16.msra.mxu0 0
        %1457 = vmatpush.bf16.msra.mxu0 0
        %1458 = vmatpush.bf16.msra.mxu0 0
        %1459 = vmatpush.bf16.msra.mxu0 0
        %1460 = vmatpush.bf16.msra.mxu0 0
        %1461 = vmatpush.bf16.msra.mxu0 0
        %1462 = vmatpush.bf16.msra.mxu0 0
        %1463 = vmatpush.bf16.msra.mxu0 %v1451
        %1464 = vmatmul.bf16.gmra.mxu0 %v1454
        %v1465 = vpop.f32.mrf.mxu0
        %v1466 = vadd.f32 0.0, %v1465
        %v1467 = vpop.f32.mrf.mxu0
        %1468 = vdwg.mxu0
        %s1469 = scalar_lea.vmem [#allocation8], %s1444
        %1470 = vst [vmem:[%s1469] sm:$0xff] %v1466
        %p1471 = scmp.eq.s32.totalorder %s46, 1
        // Predicated region
        $region137: #{tpu_custom_call.1} parent=123 // pred_check
          %p1472 = pneg %p1471
        $region138: #{tpu_custom_call.1} parent=123 // pred_check_branch
          %1474 = sbr.rel (%p1472) target = $region140
        $region139: #{tpu_custom_call.1} parent=123 // pred_region
          %v1475 = vld [vmem:[%s9] sm:$0xff]
          %v1476 = vld [vmem:[%s20] sm:$0xff]
          %v1477 = vld [vmem:[%s21] sm:$0x1]
          %v1479 = vperm.slane %v1477, 0
          %vm1481 = vcmask 64512
          %v1483 = vsel %vm1481, %v1475, 0
          %1485 = vmatpush.msra.mxu0 0.0
          %1486 = vmatpush.msra.mxu0 0.0
          %1487 = vmatpush.msra.mxu0 0.0
          %1488 = vmatpush.msra.mxu0 0.0
          %1489 = vmatpush.msra.mxu0 0.0
          %1490 = vmatpush.msra.mxu0 0.0
          %1491 = vmatpush.msra.mxu0 0.0
          %1492 = vmatpush.msra.mxu0 0.0
          %1493 = vmatpush.msra.mxu0 0.0
          %1494 = vmatpush.msra.mxu0 0.0
          %1495 = vmatpush.msra.mxu0 0.0
          %1496 = vmatpush.msra.mxu0 0.0
          %1497 = vmatpush.msra.mxu0 0.0
          %1498 = vmatpush.msra.mxu0 0.0
          %1499 = vmatpush.msra.mxu0 0.0
          %1500 = vmatpush.msra.mxu0 %v1476
          %1501 = vmatmul.f32.gmra.mxu0 %v1483
          %v1502 = vpop.f32.mrf.mxu0
          %v1503 = vadd.f32 %v1479, %v1502
          %1504 = vdwg.mxu0
          %v1505 = vld [vmem:[%s24] sm:$0x1]
          %v1507 = vperm.slane %v1505, 0
          %v1509 = vmul.f32 %v1503, %v1507
          %v1510 = vsel %vm1481, %v1509, 0.0
          %1511 = vadd.xlane.f32.xlu0 %v1510
          %v1512 = vpop.xlane.xlu0 %1511
          %v1513 = vld [vmem:[#allocation7] sm:$0xff]
          %v1514 = vld [vmem:[%s22] sm:$0x1]
          %v1516 = vperm.slane %v1514, 0
          %v1518 = vmul.f32 %v1513, %v1516
          %1519 = vadd.xlane.f32.xlu0 %v1518
          %v1520 = vpop.xlane.xlu0 %1519
          %v1521 = vadd.f32 %v1512, %v1520
          %v1522 = vld [vmem:[#allocation8] sm:$0xff]
          %v1523 = vld [vmem:[%s23] sm:$0x1]
          %v1525 = vperm.slane %v1523, 0
          %v1527 = vmul.f32 %v1522, %v1525
          %1528 = vadd.xlane.f32.xlu0 %v1527
          %v1529 = vpop.xlane.xlu0 %1528
          %v1530 = vadd.f32 %v1521, %v1529
          %s1531 = scalar_lea.vmem [#allocation7], 8
          %v1532 = vld [vmem:[%s1531] sm:$0xff]
          %s1533 = scalar_lea.vmem %s22, 1
          %v1534 = vld [vmem:[%s1533] sm:$0x1]
          %v1536 = vperm.slane %v1534, 0
          %v1538 = vmul.f32 %v1532, %v1536
          %1539 = vadd.xlane.f32.xlu0 %v1538
          %v1540 = vpop.xlane.xlu0 %1539
          %v1541 = vadd.f32 %v1530, %v1540
          %s1542 = scalar_lea.vmem [#allocation8], 8
          %v1543 = vld [vmem:[%s1542] sm:$0xff]
          %s1544 = scalar_lea.vmem %s23, 1
          %v1545 = vld [vmem:[%s1544] sm:$0x1]
          %v1547 = vperm.slane %v1545, 0
          %v1549 = vmul.f32 %v1543, %v1547
          %1550 = vadd.xlane.f32.xlu0 %v1549
          %v1551 = vpop.xlane.xlu0 %1550
          %v1552 = vadd.f32 %v1541, %v1551
          %v1553 = vld [vmem:[#allocation9] sm:$0x1]
          %v1555 = vperm.slane %v1553, 0
          %v1557 = vadd.f32 %v1552, %v1555
          %1559 = vset.pattern.permute.xlu0 0
          %1560 = vperm.xlu0 %1559, %v1557
          %v1561 = vpop.permute.xlu0 %1560
          %1563 = vst [vmem:[#allocation15] sm:$0xff] %v1561
        $region140: #{tpu_custom_call.1} parent=123 // pred_fallthru
          _
        // Predicated region
        $region141: #{tpu_custom_call.1} parent=123 // pred_check
          %p1564 = pneg %p625
        $region142: #{tpu_custom_call.1} parent=123 // pred_check_branch
          %1566 = sbr.rel (%p1564) target = $region144
        $region143: #{tpu_custom_call.1} parent=123 // pred_region
          %1568 = vsyncadd [#allocation12], 0
          %s1570 = sshll.u32 [#allocation15], 4
          %s1571 = int_to_ptr.vmem [resolvable:$true] %s1570
          %s1572 = sshll.u32 %s26, 4
          %s1573 = int_to_ptr.hbm [resolvable:$true] %s1572
          %1575 = dma.vmem_to_hbm [thread:$0]  %s1571, 128, %s1573, [#allocation12]
        $region144: #{tpu_custom_call.1} parent=123 // pred_fallthru
          _
        // Predicated region
        $region145: #{tpu_custom_call.1} parent=123 // pred_check
          %p1576 = pneg %p625
        $region146: #{tpu_custom_call.1} parent=123 // pred_check_branch
          %1578 = sbr.rel (%p1576) target = $region148
        $region147: #{tpu_custom_call.1} parent=123 // pred_region
          %1580 = dma.done [#allocation12], 128
        $region148: #{tpu_custom_call.1} parent=123 // pred_fallthru
          _
      $region124: #{tpu_custom_call.1} parent=5 // pred_fallthru
        _
      %p1581 = scmp.le.s32.totalorder 2, %s41
      // Predicated region
      $region149: #{tpu_custom_call.1} parent=5 // pred_check
        %p1582 = pneg %p1581
      $region150: #{tpu_custom_call.1} parent=5 // pred_check_branch
        %1584 = sbr.rel (%p1582) target = $region152
      $region151: #{tpu_custom_call.1} parent=5 // pred_region
        %s1585 = ssub.s32 %s41, 2
      $region152: #{tpu_custom_call.1} parent=5 // pred_fallthru
        _
    $region6: #{tpu_custom_call.1} parent=1 // loop_footer
      %s45 = sadd.s32 1, %s41
    $region7: #{tpu_custom_call.1} parent=1 // loop_footer_branch
      %40 = sbr.rel target = $region3
    $region8: #{tpu_custom_call.1} parent=1 // loop_exit
      _
    %1586 = vsyncpa [#allocation11], 1
    %s1587 = scalar_lea.sflag [#allocation11], 1
    %1588 = vsyncpa %s1587, 1
    %1589 = vsyncpa [#allocation14], 1
    %s1590 = scalar_lea.sflag [#allocation14], 1
    %1591 = vsyncpa %s1590, 1
    %1592 = vsyncpa [#allocation12], 1
    %s1593 = scalar_lea.sflag [#allocation12], 1
    %1594 = vsyncpa %s1593, 1

</llo_original>
